<compile_context>
chip_gen: v7x
topology: tpu7x:2x2x1
jax: 0.10.0
libtpu: 0.0.40
codegen_flags: <defaults>
</compile_context>

<pallas_src>
import jax
import jax.numpy as jnp
from jax.experimental import pallas as pl
from jax.experimental.pallas import tpu as pltpu


def mlp_kernel(x_ref,
               w1, b1, w2, b2, w3, b3, w4, b4,   # hidden layers (BN folded in)
               w5, b5,                           # output layer (padded to 128 cols)
               o_ref):
    """Fused MLP forward for one batch tile.

    Each hidden block: y = relu(x_bf16 @ W_bf16 + b_f32)   (f32 MXU accumulation)
    BatchNorm1d (inference) is already folded into W/b.
    """
    def hidden_block(h, w_ref, b_ref):
        z = jnp.dot(h.astype(jnp.bfloat16), w_ref[...],
                    preferred_element_type=jnp.float32)
        z = z + b_ref[...]                 # bias (BN shift folded in), f32 epilogue
        return jnp.maximum(z, 0.0)         # ReLU

    h = x_ref[...].astype(jnp.float32)
    h = hidden_block(h, w1, b1)
    h = hidden_block(h, w2, b2)
    h = hidden_block(h, w3, b3)
    h = hidden_block(h, w4, b4)            # dropout -> identity at inference
    out = jnp.dot(h.astype(jnp.bfloat16), w5[...],
                  preferred_element_type=jnp.float32) + b5[...]
    o_ref[...] = out.astype(o_ref.dtype)


def mlp_forward(x, params, output_size, *, batch_tile=None):
    """params: [w1,b1, w2,b2, w3,b3, w4,b4, w5,b5] with BN folded and w5/b5
    padded to a lane-dense (>=128) output width. Returns [B, output_size]."""
    assert len(params) == 10, "expected 5 (W, b) pairs with BN pre-folded"
    B, F = x.shape

    if batch_tile is None:
        # Fill the MXU: big tiles, but never more than the batch itself.
        batch_tile = min(B, 256)
    assert B % batch_tile == 0
    assert batch_tile == B or batch_tile % 8 == 0, "tile must be sublane-aligned"

    out_pad = params[-1].shape[-1]          # padded (lane-dense) output width

    flat_specs = [pl.BlockSpec((batch_tile, F), lambda i: (i, 0))]

    def full_spec(arr):
        shape = arr.shape
        # Constant index_map -> block stays VMEM-resident across grid steps.
        return pl.BlockSpec(shape, lambda i: tuple(0 for _ in shape))

    for p in params:
        flat_specs.append(full_spec(p))

    fn = pl.pallas_call(
        mlp_kernel,
        out_shape=jax.ShapeDtypeStruct((B, out_pad), jnp.float32),
        grid=(B // batch_tile,),
        in_specs=flat_specs,
        out_specs=pl.BlockSpec((batch_tile, out_pad), lambda i: (i, 0)),
        compiler_params=pltpu.CompilerParams(
            dimension_semantics=("parallel",)),
    )
    out_padded = fn(x, *params)
    return out_padded[:, :output_size]


def init_params(key, in_size, hidden_sizes, output_size, *, out_pad_to=128):
    """Deterministic init mirroring the PyTorch module, with BN folded into the
    Linear weights/bias and weights cast to bf16 for the MXU.

    Linear: U(-1/sqrt(fan_in), 1/sqrt(fan_in)) for W and b (PyTorch default).
    BatchNorm1d: gamma/beta drawn randomly (deterministic), running_mean=0,
    running_var=1, eps=1e-5; folded as W' = W*scale, b' = b*scale + shift.
    The final layer is zero-padded to `out_pad_to` columns (lane-dense output).
    """
    eps = 1e-5
    params = []
    dims = [in_size] + list(hidden_sizes)
    for i in range(len(hidden_sizes)):
        fan_in, fan_out = dims[i], dims[i + 1]
        key, kw, kb, kg, kbt = jax.random.split(key, 5)
        bound = 1.0 / jnp.sqrt(fan_in)
        w = jax.random.uniform(kw, (fan_in, fan_out), jnp.float32, -bound, bound)
        b = jax.random.uniform(kb, (1, fan_out), jnp.float32, -bound, bound)
        gamma = 1.0 + 0.1 * jax.random.normal(kg, (1, fan_out), jnp.float32)
        beta = 0.1 * jax.random.normal(kbt, (1, fan_out), jnp.float32)
        running_mean = jnp.zeros((1, fan_out), jnp.float32)
        running_var = jnp.ones((1, fan_out), jnp.float32)
        scale = gamma / jnp.sqrt(running_var + eps)
        shift = beta - running_mean * scale
        w_folded = (w * scale).astype(jnp.bfloat16)        # BN folded, bf16 for MXU
        b_folded = (b * scale + shift).astype(jnp.float32)  # f32 epilogue bias
        params.extend([w_folded, b_folded])

    # Output layer, zero-padded to a lane-dense width.
    fan_in = hidden_sizes[-1]
    key, kw, kb = jax.random.split(key, 3)
    bound = 1.0 / jnp.sqrt(fan_in)
    w = jax.random.uniform(kw, (fan_in, output_size), jnp.float32, -bound, bound)
    b = jax.random.uniform(kb, (1, output_size), jnp.float32, -bound, bound)
    pad = max(out_pad_to, output_size) - output_size
    w_pad = jnp.pad(w, ((0, 0), (0, pad))).astype(jnp.bfloat16)
    b_pad = jnp.pad(b, ((0, 0), (0, pad))).astype(jnp.float32)
    params.extend([w_pad, b_pad])
    return params


def reference_forward(x, params, output_size):
    """Pure-JAX reference using the same bf16-operand / f32-accumulate math."""
    h = x.astype(jnp.float32)
    for li in range(4):
        w, b = params[2 * li], params[2 * li + 1]
        h = jnp.dot(h.astype(jnp.bfloat16), w, preferred_element_type=jnp.float32) + b
        h = jnp.maximum(h, 0.0)
    w, b = params[8], params[9]
    out = jnp.dot(h.astype(jnp.bfloat16), w, preferred_element_type=jnp.float32) + b
    return out[:, :output_size]


if __name__ == "__main__":
    in_size = 32
    hidden_sizes = [64, 256, 512, 256]
    output_size = 1
    batch = 256          # small overall, but lets us use 128-row MXU-filling tiles
    batch_tile = 128     # 2 grid steps -> both TensorCores busy on v7x

    key = jax.random.PRNGKey(0)
    key, kx = jax.random.split(key)
    x = jax.random.normal(kx, (batch, in_size), jnp.float32)

    params = init_params(key, in_size, hidden_sizes, output_size)

    out = mlp_forward(x, params, output_size, batch_tile=batch_tile)
    out = jax.block_until_ready(out)

    ref = reference_forward(x, params, output_size)
    assert out.shape == (batch, output_size)
    assert jnp.allclose(out, ref, atol=1e-2, rtol=1e-2), "mismatch vs reference"

    print("KERNEL_OK")
</pallas_src>

<mosaic_0001>
module attributes {stable_mosaic.version = 11 : i64} {
  func.func @mlp_kernel(%arg0: i32, %arg1: memref<128x32xf32, #tpu.memory_space<vmem>>, %arg2: memref<32x64xbf16, #tpu.memory_space<vmem>>, %arg3: memref<1x64xf32, #tpu.memory_space<vmem>>, %arg4: memref<64x256xbf16, #tpu.memory_space<vmem>>, %arg5: memref<1x256xf32, #tpu.memory_space<vmem>>, %arg6: memref<256x512xbf16, #tpu.memory_space<vmem>>, %arg7: memref<1x512xf32, #tpu.memory_space<vmem>>, %arg8: memref<512x256xbf16, #tpu.memory_space<vmem>>, %arg9: memref<1x256xf32, #tpu.memory_space<vmem>>, %arg10: memref<256x128xbf16, #tpu.memory_space<vmem>>, %arg11: memref<1x128xf32, #tpu.memory_space<vmem>>, %arg12: memref<128x128xf32, #tpu.memory_space<vmem>>) attributes {dimension_semantics = [#tpu.dimension_semantics<parallel>], iteration_bounds = array<i64: 2>, scalar_prefetch = 0 : i64, scratch_operands = 0 : i64, tpu.core_type = #tpu.core_type<tc>, window_params = [{transform_indices = @transform_0, window_bounds = array<i64: 128, 32>}, {pipeline_mode = #tpu.pipeline_mode<synchronous>, transform_indices = @transform_1, window_bounds = array<i64: 32, 64>}, {pipeline_mode = #tpu.pipeline_mode<synchronous>, transform_indices = @transform_2, window_bounds = array<i64: 1, 64>}, {pipeline_mode = #tpu.pipeline_mode<synchronous>, transform_indices = @transform_3, window_bounds = array<i64: 64, 256>}, {pipeline_mode = #tpu.pipeline_mode<synchronous>, transform_indices = @transform_4, window_bounds = array<i64: 1, 256>}, {pipeline_mode = #tpu.pipeline_mode<synchronous>, transform_indices = @transform_5, window_bounds = array<i64: 256, 512>}, {pipeline_mode = #tpu.pipeline_mode<synchronous>, transform_indices = @transform_6, window_bounds = array<i64: 1, 512>}, {pipeline_mode = #tpu.pipeline_mode<synchronous>, transform_indices = @transform_7, window_bounds = array<i64: 512, 256>}, {pipeline_mode = #tpu.pipeline_mode<synchronous>, transform_indices = @transform_8, window_bounds = array<i64: 1, 256>}, {pipeline_mode = #tpu.pipeline_mode<synchronous>, transform_indices = @transform_9, window_bounds = array<i64: 256, 128>}, {pipeline_mode = #tpu.pipeline_mode<synchronous>, transform_indices = @transform_10, window_bounds = array<i64: 1, 128>}, {transform_indices = @transform_11, window_bounds = array<i64: 128, 128>}]} {
    %c0 = arith.constant 0 : index
    %c0_0 = arith.constant 0 : index
    %0 = vector.load %arg1[%c0, %c0_0] : memref<128x32xf32, #tpu.memory_space<vmem>>, vector<128x32xf32>
    %1 = arith.truncf %0 : vector<128x32xf32> to vector<128x32xbf16>
    %c0_1 = arith.constant 0 : index
    %c0_2 = arith.constant 0 : index
    %2 = vector.load %arg2[%c0_1, %c0_2] : memref<32x64xbf16, #tpu.memory_space<vmem>>, vector<32x64xbf16>
    %cst = arith.constant dense<0.000000e+00> : vector<128x64xf32>
    %3 = tpu.matmul %1, %2, %cst {dimension_numbers = #tpu.dot_dimension_numbers<[1], [0], [0], [1], [0, 0, 1, 1], [], []>} : vector<128x32xbf16>, vector<32x64xbf16>, vector<128x64xf32> -> vector<128x64xf32>
    %c0_3 = arith.constant 0 : index
    %c0_4 = arith.constant 0 : index
    %4 = vector.load %arg3[%c0_3, %c0_4] : memref<1x64xf32, #tpu.memory_space<vmem>>, vector<1x64xf32>
    %5 = vector.broadcast %4 : vector<1x64xf32> to vector<128x64xf32>
    %6 = arith.addf %3, %5 : vector<128x64xf32>
    %cst_5 = arith.constant 0.000000e+00 : f32
    %7 = vector.broadcast %cst_5 : f32 to vector<128x64xf32>
    %8 = arith.maximumf %6, %7 : vector<128x64xf32>
    %9 = arith.truncf %8 : vector<128x64xf32> to vector<128x64xbf16>
    %c0_6 = arith.constant 0 : index
    %c0_7 = arith.constant 0 : index
    %10 = vector.load %arg4[%c0_6, %c0_7] : memref<64x256xbf16, #tpu.memory_space<vmem>>, vector<64x256xbf16>
    %cst_8 = arith.constant dense<0.000000e+00> : vector<128x256xf32>
    %11 = tpu.matmul %9, %10, %cst_8 {dimension_numbers = #tpu.dot_dimension_numbers<[1], [0], [0], [1], [0, 0, 1, 1], [], []>} : vector<128x64xbf16>, vector<64x256xbf16>, vector<128x256xf32> -> vector<128x256xf32>
    %c0_9 = arith.constant 0 : index
    %c0_10 = arith.constant 0 : index
    %12 = vector.load %arg5[%c0_9, %c0_10] : memref<1x256xf32, #tpu.memory_space<vmem>>, vector<1x256xf32>
    %13 = vector.broadcast %12 : vector<1x256xf32> to vector<128x256xf32>
    %14 = arith.addf %11, %13 : vector<128x256xf32>
    %cst_11 = arith.constant 0.000000e+00 : f32
    %15 = vector.broadcast %cst_11 : f32 to vector<128x256xf32>
    %16 = arith.maximumf %14, %15 : vector<128x256xf32>
    %17 = arith.truncf %16 : vector<128x256xf32> to vector<128x256xbf16>
    %c0_12 = arith.constant 0 : index
    %c0_13 = arith.constant 0 : index
    %18 = vector.load %arg6[%c0_12, %c0_13] : memref<256x512xbf16, #tpu.memory_space<vmem>>, vector<256x512xbf16>
    %cst_14 = arith.constant dense<0.000000e+00> : vector<128x512xf32>
    %19 = tpu.matmul %17, %18, %cst_14 {dimension_numbers = #tpu.dot_dimension_numbers<[1], [0], [0], [1], [0, 0, 1, 1], [], []>} : vector<128x256xbf16>, vector<256x512xbf16>, vector<128x512xf32> -> vector<128x512xf32>
    %c0_15 = arith.constant 0 : index
    %c0_16 = arith.constant 0 : index
    %20 = vector.load %arg7[%c0_15, %c0_16] : memref<1x512xf32, #tpu.memory_space<vmem>>, vector<1x512xf32>
    %21 = vector.broadcast %20 : vector<1x512xf32> to vector<128x512xf32>
    %22 = arith.addf %19, %21 : vector<128x512xf32>
    %cst_17 = arith.constant 0.000000e+00 : f32
    %23 = vector.broadcast %cst_17 : f32 to vector<128x512xf32>
    %24 = arith.maximumf %22, %23 : vector<128x512xf32>
    %25 = arith.truncf %24 : vector<128x512xf32> to vector<128x512xbf16>
    %c0_18 = arith.constant 0 : index
    %c0_19 = arith.constant 0 : index
    %26 = vector.load %arg8[%c0_18, %c0_19] : memref<512x256xbf16, #tpu.memory_space<vmem>>, vector<512x256xbf16>
    %cst_20 = arith.constant dense<0.000000e+00> : vector<128x256xf32>
    %27 = tpu.matmul %25, %26, %cst_20 {dimension_numbers = #tpu.dot_dimension_numbers<[1], [0], [0], [1], [0, 0, 1, 1], [], []>} : vector<128x512xbf16>, vector<512x256xbf16>, vector<128x256xf32> -> vector<128x256xf32>
    %c0_21 = arith.constant 0 : index
    %c0_22 = arith.constant 0 : index
    %28 = vector.load %arg9[%c0_21, %c0_22] : memref<1x256xf32, #tpu.memory_space<vmem>>, vector<1x256xf32>
    %29 = vector.broadcast %28 : vector<1x256xf32> to vector<128x256xf32>
    %30 = arith.addf %27, %29 : vector<128x256xf32>
    %cst_23 = arith.constant 0.000000e+00 : f32
    %31 = vector.broadcast %cst_23 : f32 to vector<128x256xf32>
    %32 = arith.maximumf %30, %31 : vector<128x256xf32>
    %33 = arith.truncf %32 : vector<128x256xf32> to vector<128x256xbf16>
    %c0_24 = arith.constant 0 : index
    %c0_25 = arith.constant 0 : index
    %34 = vector.load %arg10[%c0_24, %c0_25] : memref<256x128xbf16, #tpu.memory_space<vmem>>, vector<256x128xbf16>
    %cst_26 = arith.constant dense<0.000000e+00> : vector<128x128xf32>
    %35 = tpu.matmul %33, %34, %cst_26 {dimension_numbers = #tpu.dot_dimension_numbers<[1], [0], [0], [1], [0, 0, 1, 1], [], []>} : vector<128x256xbf16>, vector<256x128xbf16>, vector<128x128xf32> -> vector<128x128xf32>
    %c0_27 = arith.constant 0 : index
    %c0_28 = arith.constant 0 : index
    %36 = vector.load %arg11[%c0_27, %c0_28] : memref<1x128xf32, #tpu.memory_space<vmem>>, vector<1x128xf32>
    %37 = vector.broadcast %36 : vector<1x128xf32> to vector<128x128xf32>
    %38 = arith.addf %35, %37 : vector<128x128xf32>
    %c0_29 = arith.constant 0 : index
    %c0_30 = arith.constant 0 : index
    %39 = vector.load %arg12[%c0_29, %c0_30] : memref<128x128xf32, #tpu.memory_space<vmem>>, vector<128x128xf32>
    tpu.vector_store %arg12[%c0_29, %c0_30], %38 {strides = array<i32>} : memref<128x128xf32, #tpu.memory_space<vmem>>, vector<128x128xf32>,
    return
  }
  func.func @transform_0(%arg0: i32) -> (i32, i32) {
    %c0_i32 = arith.constant 0 : i32
    %c0_i32_0 = arith.constant 0 : i32
    return %arg0, %c0_i32 : i32, i32
  }
  func.func @transform_1(%arg0: i32) -> (i32, i32) {
    %c0_i32 = arith.constant 0 : i32
    %c0_i32_0 = arith.constant 0 : i32
    %c0_i32_1 = arith.constant 0 : i32
    return %c0_i32, %c0_i32_0 : i32, i32
  }
  func.func @transform_2(%arg0: i32) -> (i32, i32) {
    %c0_i32 = arith.constant 0 : i32
    %c0_i32_0 = arith.constant 0 : i32
    %c0_i32_1 = arith.constant 0 : i32
    return %c0_i32, %c0_i32_0 : i32, i32
  }
  func.func @transform_3(%arg0: i32) -> (i32, i32) {
    %c0_i32 = arith.constant 0 : i32
    %c0_i32_0 = arith.constant 0 : i32
    %c0_i32_1 = arith.constant 0 : i32
    return %c0_i32, %c0_i32_0 : i32, i32
  }
  func.func @transform_4(%arg0: i32) -> (i32, i32) {
    %c0_i32 = arith.constant 0 : i32
    %c0_i32_0 = arith.constant 0 : i32
    %c0_i32_1 = arith.constant 0 : i32
    return %c0_i32, %c0_i32_0 : i32, i32
  }
  func.func @transform_5(%arg0: i32) -> (i32, i32) {
    %c0_i32 = arith.constant 0 : i32
    %c0_i32_0 = arith.constant 0 : i32
    %c0_i32_1 = arith.constant 0 : i32
    return %c0_i32, %c0_i32_0 : i32, i32
  }
  func.func @transform_6(%arg0: i32) -> (i32, i32) {
    %c0_i32 = arith.constant 0 : i32
    %c0_i32_0 = arith.constant 0 : i32
    %c0_i32_1 = arith.constant 0 : i32
    return %c0_i32, %c0_i32_0 : i32, i32
  }
  func.func @transform_7(%arg0: i32) -> (i32, i32) {
    %c0_i32 = arith.constant 0 : i32
    %c0_i32_0 = arith.constant 0 : i32
    %c0_i32_1 = arith.constant 0 : i32
    return %c0_i32, %c0_i32_0 : i32, i32
  }
  func.func @transform_8(%arg0: i32) -> (i32, i32) {
    %c0_i32 = arith.constant 0 : i32
    %c0_i32_0 = arith.constant 0 : i32
    %c0_i32_1 = arith.constant 0 : i32
    return %c0_i32, %c0_i32_0 : i32, i32
  }
  func.func @transform_9(%arg0: i32) -> (i32, i32) {
    %c0_i32 = arith.constant 0 : i32
    %c0_i32_0 = arith.constant 0 : i32
    %c0_i32_1 = arith.constant 0 : i32
    return %c0_i32, %c0_i32_0 : i32, i32
  }
  func.func @transform_10(%arg0: i32) -> (i32, i32) {
    %c0_i32 = arith.constant 0 : i32
    %c0_i32_0 = arith.constant 0 : i32
    %c0_i32_1 = arith.constant 0 : i32
    return %c0_i32, %c0_i32_0 : i32, i32
  }
  func.func @transform_11(%arg0: i32) -> (i32, i32) {
    %c0_i32 = arith.constant 0 : i32
    %c0_i32_0 = arith.constant 0 : i32
    return %arg0, %c0_i32 : i32, i32
  }
}

</mosaic_0001>

<llo_original>
// kernel: tpu_custom_call.1
$region0: #{tpu_custom_call.1}
  #allocation0 [shape = 'u32[]', space=smem, size = 0x4, offset = 0x4, fixed_abs, tag = 'smem constant byte address 0x4 - core index']
  #allocation1 [shape = 'u32[144,128]{1,0:T(1,128)}', space=vmem, size = 0x12000, scoped, tag = 'internal scratch']
  %s0 = inlined_call_operand.vmem [shape: f32[256,32], index: 0, kind: input, shape index: {}]
  %s1 = inlined_call_operand.vmem [shape: bf16[32,64], index: 1, kind: input, shape index: {}]
  %s2 = inlined_call_operand.vmem [shape: f32[1,64], index: 2, kind: input, shape index: {}]
  %s3 = inlined_call_operand.vmem [shape: bf16[64,256], index: 3, kind: input, shape index: {}]
  %s4 = inlined_call_operand.vmem [shape: f32[1,256], index: 4, kind: input, shape index: {}]
  %s5 = inlined_call_operand.hbm [shape: bf16[256,512], index: 5, kind: input, shape index: {}]
  %s6 = inlined_call_operand.vmem [shape: f32[1,512], index: 6, kind: input, shape index: {}]
  %s7 = inlined_call_operand.hbm [shape: bf16[512,256], index: 7, kind: input, shape index: {}]
  %s8 = inlined_call_operand.vmem [shape: f32[1,256], index: 8, kind: input, shape index: {}]
  %s9 = inlined_call_operand.vmem [shape: bf16[256,128], index: 9, kind: input, shape index: {}]
  %s10 = inlined_call_operand.vmem [shape: f32[1,128], index: 10, kind: input, shape index: {}]
  %s11 = inlined_call_operand.hbm [shape: f32[256,128], index: 11, kind: output, shape index: {}]
  %s12 = sld [smem:[#allocation0]]
  $region85: #{tpu_custom_call.1} parent=0
    _
  %s14 = ssub.s32 1, %s12
  %s15 = scalar_select 0, %s14, %s12
  $region1: #{tpu_custom_call.1} parent=0
    #allocation2 [shape = 'u8[262144]{0}', space=vmem, size = 0x40000, scoped, tag = 'input window, operand 5, single buffered']
    #allocation3 [shape = 's32[2]{0}', space=sflag, size = 0x8, scoped, tag = 'scoped memory for tpu_custom_call.1']
    #allocation4 [shape = 's32[2]{0}', space=sflag, size = 0x8, scoped, tag = 'scoped memory for tpu_custom_call.1']
    #allocation5 [shape = 'u8[262144]{0}', space=vmem, size = 0x40000, scoped, tag = 'input window, operand 7, single buffered']
    #allocation6 [shape = 's32[1]{0}', space=sflag, size = 0x4, scoped, tag = 'scoped memory for tpu_custom_call.1']
    #allocation7 [shape = 'u8[131072]{0}', space=vmem, size = 0x20000, scoped, tag = 'output window, operand 0']
    %16 = vsyncpa [#allocation3], 0
    %17 = vsyncpa [#allocation6], 0
    %18 = vsyncpa [#allocation4], 0
    %s19 = scalar_lea.sflag [#allocation4], 1
    %20 = vsyncpa %s19, 0
    loop: start=0, step=1, limit=4
    $region2: #{tpu_custom_call.1} parent=1 // loop_pre_header
      _
    $region3: #{tpu_custom_call.1} parent=1 // loop_header
      %s22 = sphi 0, %s26
      %p23 = scmp.ge.s32.totalorder %s22, 4
      %s32 = sphi 0, %s34
      %s35 = sphi 0, %s32
      %s36 = sphi 0, %s35
      %s52 = sphi 0, %s36
      %s56 = sphi 0, %s56
      %s58 = sphi 0, %s56
      %s59 = sphi 0, %s58
      %s73 = sphi 0, %s59
      %s77 = sphi 0, %s77
      %s79 = sphi 0, %s77
      %s80 = sphi 0, %s79
      %s94 = sphi 0, %s80
      %s98 = sphi 0, %s98
      %s100 = sphi 0, %s98
      %s101 = sphi 0, %s100
      %s115 = sphi 0, %s101
      %s119 = sphi 0, %s119
      %s121 = sphi 0, %s119
      %s122 = sphi 0, %s121
      %s136 = sphi 0, %s122
      %s140 = sphi 0, %s140
      %s142 = sphi 0, %s140
      %s143 = sphi 0, %s142
      %s157 = sphi 0, %s143
      %s161 = sphi 0, %s161
      %s163 = sphi 0, %s161
      %s164 = sphi 0, %s163
      %s178 = sphi 0, %s164
      %s182 = sphi 0, %s182
      %s184 = sphi 0, %s182
      %s185 = sphi 0, %s184
      %s199 = sphi 0, %s185
      %s203 = sphi 0, %s203
      %s205 = sphi 0, %s203
      %s206 = sphi 0, %s205
      %s220 = sphi 0, %s206
      %s224 = sphi 0, %s224
      %s226 = sphi 0, %s224
      %s227 = sphi 0, %s226
      %s241 = sphi 0, %s227
      %s245 = sphi 0, %s245
      %s247 = sphi 0, %s245
      %s248 = sphi 0, %s247
      %s262 = sphi 0, %s248
      %s268 = sphi 0, %s270
      %s271 = sphi 0, %s268
      %s272 = sphi 0, %s271
      %s288 = sphi 0, %s272
    $region4: #{tpu_custom_call.1} parent=1 // loop_header_branch
      %25 = sbr.rel (%p23) target = $region8
    $region5: #{tpu_custom_call.1} parent=1 // loop_body
      %s27 = ssub.s32 %s22, 1
      %s28 = ssub.s32 %s22, 2
      %s29 = sadd.s32 %s22, 1
      %s30 = ssub.s32 %s22, %s29
      %p31 = scmp.eq.s32.totalorder %s30, 0
      %s33 = sadd.s32 %s32, 1
      %s34 = scalar_select %p31, %s32, %s33
      %p37 = pneg %p31
      %p38 = scmp.eq.s32.totalorder %s22, 1
      %p39 = por %p37, %p38
      %p40 = scmp.ne.s32.totalorder %s32, %s35
      %p41 = scmp.eq.s32.totalorder %s22, 0
      %p42 = por %p40, %p41
      %p43 = scmp.ne.s32.totalorder %s32, %s35
      %p44 = scmp.eq.s32.totalorder %s27, 1
      %p45 = por %p43, %p44
      %p46 = scmp.ne.s32.totalorder %s35, %s36
      %p47 = scmp.eq.s32.totalorder %s27, 0
      %p48 = por %p46, %p47
      %p49 = scmp.ne.s32.totalorder %s35, %s36
      %p50 = scmp.eq.s32.totalorder %s28, 1
      %p51 = por %p49, %p50
      %p53 = scmp.ne.s32.totalorder %s36, %s52
      %p54 = scmp.eq.s32.totalorder %s28, 0
      %p55 = por %p53, %p54
      %s57 = sadd.s32 %s56, 1
      %p60 = scmp.eq.s32.totalorder %s22, 1
      %p61 = scmp.ne.s32.totalorder %s56, %s58
      %p62 = scmp.eq.s32.totalorder %s22, 0
      %p63 = por %p61, %p62
      %p64 = scmp.ne.s32.totalorder %s56, %s58
      %p65 = scmp.eq.s32.totalorder %s27, 1
      %p66 = por %p64, %p65
      %p67 = scmp.ne.s32.totalorder %s58, %s59
      %p68 = scmp.eq.s32.totalorder %s27, 0
      %p69 = por %p67, %p68
      %p70 = scmp.ne.s32.totalorder %s58, %s59
      %p71 = scmp.eq.s32.totalorder %s28, 1
      %p72 = por %p70, %p71
      %p74 = scmp.ne.s32.totalorder %s59, %s73
      %p75 = scmp.eq.s32.totalorder %s28, 0
      %p76 = por %p74, %p75
      %s78 = sadd.s32 %s77, 1
      %p81 = scmp.eq.s32.totalorder %s22, 1
      %p82 = scmp.ne.s32.totalorder %s77, %s79
      %p83 = scmp.eq.s32.totalorder %s22, 0
      %p84 = por %p82, %p83
      %p85 = scmp.ne.s32.totalorder %s77, %s79
      %p86 = scmp.eq.s32.totalorder %s27, 1
      %p87 = por %p85, %p86
      %p88 = scmp.ne.s32.totalorder %s79, %s80
      %p89 = scmp.eq.s32.totalorder %s27, 0
      %p90 = por %p88, %p89
      %p91 = scmp.ne.s32.totalorder %s79, %s80
      %p92 = scmp.eq.s32.totalorder %s28, 1
      %p93 = por %p91, %p92
      %p95 = scmp.ne.s32.totalorder %s80, %s94
      %p96 = scmp.eq.s32.totalorder %s28, 0
      %p97 = por %p95, %p96
      %s99 = sadd.s32 %s98, 1
      %p102 = scmp.eq.s32.totalorder %s22, 1
      %p103 = scmp.ne.s32.totalorder %s98, %s100
      %p104 = scmp.eq.s32.totalorder %s22, 0
      %p105 = por %p103, %p104
      %p106 = scmp.ne.s32.totalorder %s98, %s100
      %p107 = scmp.eq.s32.totalorder %s27, 1
      %p108 = por %p106, %p107
      %p109 = scmp.ne.s32.totalorder %s100, %s101
      %p110 = scmp.eq.s32.totalorder %s27, 0
      %p111 = por %p109, %p110
      %p112 = scmp.ne.s32.totalorder %s100, %s101
      %p113 = scmp.eq.s32.totalorder %s28, 1
      %p114 = por %p112, %p113
      %p116 = scmp.ne.s32.totalorder %s101, %s115
      %p117 = scmp.eq.s32.totalorder %s28, 0
      %p118 = por %p116, %p117
      %s120 = sadd.s32 %s119, 1
      %p123 = scmp.eq.s32.totalorder %s22, 1
      %p124 = scmp.ne.s32.totalorder %s119, %s121
      %p125 = scmp.eq.s32.totalorder %s22, 0
      %p126 = por %p124, %p125
      %p127 = scmp.ne.s32.totalorder %s119, %s121
      %p128 = scmp.eq.s32.totalorder %s27, 1
      %p129 = por %p127, %p128
      %p130 = scmp.ne.s32.totalorder %s121, %s122
      %p131 = scmp.eq.s32.totalorder %s27, 0
      %p132 = por %p130, %p131
      %p133 = scmp.ne.s32.totalorder %s121, %s122
      %p134 = scmp.eq.s32.totalorder %s28, 1
      %p135 = por %p133, %p134
      %p137 = scmp.ne.s32.totalorder %s122, %s136
      %p138 = scmp.eq.s32.totalorder %s28, 0
      %p139 = por %p137, %p138
      %s141 = sadd.s32 %s140, 1
      %p144 = scmp.eq.s32.totalorder %s22, 1
      %p145 = scmp.ne.s32.totalorder %s140, %s142
      %p146 = scmp.eq.s32.totalorder %s22, 0
      %p147 = por %p145, %p146
      %p148 = scmp.ne.s32.totalorder %s140, %s142
      %p149 = scmp.eq.s32.totalorder %s27, 1
      %p150 = por %p148, %p149
      %p151 = scmp.ne.s32.totalorder %s142, %s143
      %p152 = scmp.eq.s32.totalorder %s27, 0
      %p153 = por %p151, %p152
      %p154 = scmp.ne.s32.totalorder %s142, %s143
      %p155 = scmp.eq.s32.totalorder %s28, 1
      %p156 = por %p154, %p155
      %p158 = scmp.ne.s32.totalorder %s143, %s157
      %p159 = scmp.eq.s32.totalorder %s28, 0
      %p160 = por %p158, %p159
      %s162 = sadd.s32 %s161, 1
      %p165 = scmp.eq.s32.totalorder %s22, 1
      %p166 = scmp.ne.s32.totalorder %s161, %s163
      %p167 = scmp.eq.s32.totalorder %s22, 0
      %p168 = por %p166, %p167
      %p169 = scmp.ne.s32.totalorder %s161, %s163
      %p170 = scmp.eq.s32.totalorder %s27, 1
      %p171 = por %p169, %p170
      %p172 = scmp.ne.s32.totalorder %s163, %s164
      %p173 = scmp.eq.s32.totalorder %s27, 0
      %p174 = por %p172, %p173
      %p175 = scmp.ne.s32.totalorder %s163, %s164
      %p176 = scmp.eq.s32.totalorder %s28, 1
      %p177 = por %p175, %p176
      %p179 = scmp.ne.s32.totalorder %s164, %s178
      %p180 = scmp.eq.s32.totalorder %s28, 0
      %p181 = por %p179, %p180
      %s183 = sadd.s32 %s182, 1
      %p186 = scmp.eq.s32.totalorder %s22, 1
      %p187 = scmp.ne.s32.totalorder %s182, %s184
      %p188 = scmp.eq.s32.totalorder %s22, 0
      %p189 = por %p187, %p188
      %p190 = scmp.ne.s32.totalorder %s182, %s184
      %p191 = scmp.eq.s32.totalorder %s27, 1
      %p192 = por %p190, %p191
      %p193 = scmp.ne.s32.totalorder %s184, %s185
      %p194 = scmp.eq.s32.totalorder %s27, 0
      %p195 = por %p193, %p194
      %p196 = scmp.ne.s32.totalorder %s184, %s185
      %p197 = scmp.eq.s32.totalorder %s28, 1
      %p198 = por %p196, %p197
      %p200 = scmp.ne.s32.totalorder %s185, %s199
      %p201 = scmp.eq.s32.totalorder %s28, 0
      %p202 = por %p200, %p201
      %s204 = sadd.s32 %s203, 1
      %p207 = scmp.eq.s32.totalorder %s22, 1
      %p208 = scmp.ne.s32.totalorder %s203, %s205
      %p209 = scmp.eq.s32.totalorder %s22, 0
      %p210 = por %p208, %p209
      %p211 = scmp.ne.s32.totalorder %s203, %s205
      %p212 = scmp.eq.s32.totalorder %s27, 1
      %p213 = por %p211, %p212
      %p214 = scmp.ne.s32.totalorder %s205, %s206
      %p215 = scmp.eq.s32.totalorder %s27, 0
      %p216 = por %p214, %p215
      %p217 = scmp.ne.s32.totalorder %s205, %s206
      %p218 = scmp.eq.s32.totalorder %s28, 1
      %p219 = por %p217, %p218
      %p221 = scmp.ne.s32.totalorder %s206, %s220
      %p222 = scmp.eq.s32.totalorder %s28, 0
      %p223 = por %p221, %p222
      %s225 = sadd.s32 %s224, 1
      %p228 = scmp.eq.s32.totalorder %s22, 1
      %p229 = scmp.ne.s32.totalorder %s224, %s226
      %p230 = scmp.eq.s32.totalorder %s22, 0
      %p231 = por %p229, %p230
      %p232 = scmp.ne.s32.totalorder %s224, %s226
      %p233 = scmp.eq.s32.totalorder %s27, 1
      %p234 = por %p232, %p233
      %p235 = scmp.ne.s32.totalorder %s226, %s227
      %p236 = scmp.eq.s32.totalorder %s27, 0
      %p237 = por %p235, %p236
      %p238 = scmp.ne.s32.totalorder %s226, %s227
      %p239 = scmp.eq.s32.totalorder %s28, 1
      %p240 = por %p238, %p239
      %p242 = scmp.ne.s32.totalorder %s227, %s241
      %p243 = scmp.eq.s32.totalorder %s28, 0
      %p244 = por %p242, %p243
      %s246 = sadd.s32 %s245, 1
      %p249 = scmp.eq.s32.totalorder %s22, 1
      %p250 = scmp.ne.s32.totalorder %s245, %s247
      %p251 = scmp.eq.s32.totalorder %s22, 0
      %p252 = por %p250, %p251
      %p253 = scmp.ne.s32.totalorder %s245, %s247
      %p254 = scmp.eq.s32.totalorder %s27, 1
      %p255 = por %p253, %p254
      %p256 = scmp.ne.s32.totalorder %s247, %s248
      %p257 = scmp.eq.s32.totalorder %s27, 0
      %p258 = por %p256, %p257
      %p259 = scmp.ne.s32.totalorder %s247, %s248
      %p260 = scmp.eq.s32.totalorder %s28, 1
      %p261 = por %p259, %p260
      %p263 = scmp.ne.s32.totalorder %s248, %s262
      %p264 = scmp.eq.s32.totalorder %s28, 0
      %p265 = por %p263, %p264
      %s266 = ssub.s32 %s22, %s29
      %p267 = scmp.eq.s32.totalorder %s266, 0
      %s269 = sadd.s32 %s268, 1
      %s270 = scalar_select %p267, %s268, %s269
      %p273 = pneg %p267
      %p274 = scmp.eq.s32.totalorder %s22, 1
      %p275 = por %p273, %p274
      %p276 = scmp.ne.s32.totalorder %s268, %s271
      %p277 = scmp.eq.s32.totalorder %s22, 0
      %p278 = por %p276, %p277
      %p279 = scmp.ne.s32.totalorder %s268, %s271
      %p280 = scmp.eq.s32.totalorder %s27, 1
      %p281 = por %p279, %p280
      %p282 = scmp.ne.s32.totalorder %s271, %s272
      %p283 = scmp.eq.s32.totalorder %s27, 0
      %p284 = por %p282, %p283
      %p285 = scmp.ne.s32.totalorder %s271, %s272
      %p286 = scmp.eq.s32.totalorder %s28, 1
      %p287 = por %p285, %p286
      %p289 = scmp.ne.s32.totalorder %s272, %s288
      %p290 = scmp.eq.s32.totalorder %s28, 0
      %p291 = por %p289, %p290
      %p292 = scmp.le.s32.totalorder 1, %s22
      %p293 = scmp.lt.s32.totalorder %s22, 3
      %p294 = pnand %p292, %p293
      %p295 = pneg %p294
      // Predicated region
      $region9: #{tpu_custom_call.1} parent=5 // pred_check
        _
      $region10: #{tpu_custom_call.1} parent=5 // pred_check_branch
        %297 = sbr.rel (%p294) target = $region12
      $region11: #{tpu_custom_call.1} parent=5 // pred_region
        %s298 = ssub.s32 %s22, 1
        // Predicated region
        $region13: #{tpu_custom_call.1} parent=11 // pred_check
          %p299 = pneg %p69
        $region14: #{tpu_custom_call.1} parent=11 // pred_check_branch
          %301 = sbr.rel (%p299) target = $region16
        $region15: #{tpu_custom_call.1} parent=11 // pred_region
          _
        $region16: #{tpu_custom_call.1} parent=11 // pred_fallthru
          _
        // Predicated region
        $region17: #{tpu_custom_call.1} parent=11 // pred_check
          %p302 = pneg %p90
        $region18: #{tpu_custom_call.1} parent=11 // pred_check_branch
          %304 = sbr.rel (%p302) target = $region20
        $region19: #{tpu_custom_call.1} parent=11 // pred_region
          _
        $region20: #{tpu_custom_call.1} parent=11 // pred_fallthru
          _
        // Predicated region
        $region21: #{tpu_custom_call.1} parent=11 // pred_check
          %p305 = pneg %p111
        $region22: #{tpu_custom_call.1} parent=11 // pred_check_branch
          %307 = sbr.rel (%p305) target = $region24
        $region23: #{tpu_custom_call.1} parent=11 // pred_region
          _
        $region24: #{tpu_custom_call.1} parent=11 // pred_fallthru
          _
        // Predicated region
        $region25: #{tpu_custom_call.1} parent=11 // pred_check
          %p308 = pneg %p132
        $region26: #{tpu_custom_call.1} parent=11 // pred_check_branch
          %310 = sbr.rel (%p308) target = $region28
        $region27: #{tpu_custom_call.1} parent=11 // pred_region
          _
        $region28: #{tpu_custom_call.1} parent=11 // pred_fallthru
          _
        // Predicated region
        $region29: #{tpu_custom_call.1} parent=11 // pred_check
          %p311 = pneg %p153
        $region30: #{tpu_custom_call.1} parent=11 // pred_check_branch
          %313 = sbr.rel (%p311) target = $region32
        $region31: #{tpu_custom_call.1} parent=11 // pred_region
          %s315 = ssub.s32 8192, 8192
          %316 = vsyncadd [#allocation3], %s315
          %s317 = sshll.u32 [#allocation2], 4
          %s318 = int_to_ptr.vmem [resolvable:$true] %s317
          %323 = dma.hbm_to_vmem [thread:$0]  %s5, 8192, %s318, [#allocation3], 256, 256, 16
        $region32: #{tpu_custom_call.1} parent=11 // pred_fallthru
          _
        // Predicated region
        $region33: #{tpu_custom_call.1} parent=11 // pred_check
          %p324 = pneg %p174
        $region34: #{tpu_custom_call.1} parent=11 // pred_check_branch
          %326 = sbr.rel (%p324) target = $region36
        $region35: #{tpu_custom_call.1} parent=11 // pred_region
          _
        $region36: #{tpu_custom_call.1} parent=11 // pred_fallthru
          _
        // Predicated region
        $region37: #{tpu_custom_call.1} parent=11 // pred_check
          %p327 = pneg %p195
        $region38: #{tpu_custom_call.1} parent=11 // pred_check_branch
          %329 = sbr.rel (%p327) target = $region40
        $region39: #{tpu_custom_call.1} parent=11 // pred_region
          %s331 = ssub.s32 8192, 8192
          %332 = vsyncadd [#allocation6], %s331
          %s333 = sshll.u32 [#allocation5], 4
          %s334 = int_to_ptr.vmem [resolvable:$true] %s333
          %339 = dma.hbm_to_vmem [thread:$0]  %s7, 8192, %s334, [#allocation6], 128, 128, 8
        $region40: #{tpu_custom_call.1} parent=11 // pred_fallthru
          _
        // Predicated region
        $region41: #{tpu_custom_call.1} parent=11 // pred_check
          %p340 = pneg %p216
        $region42: #{tpu_custom_call.1} parent=11 // pred_check_branch
          %342 = sbr.rel (%p340) target = $region44
        $region43: #{tpu_custom_call.1} parent=11 // pred_region
          _
        $region44: #{tpu_custom_call.1} parent=11 // pred_fallthru
          _
        // Predicated region
        $region45: #{tpu_custom_call.1} parent=11 // pred_check
          %p343 = pneg %p237
        $region46: #{tpu_custom_call.1} parent=11 // pred_check_branch
          %345 = sbr.rel (%p343) target = $region48
        $region47: #{tpu_custom_call.1} parent=11 // pred_region
          _
        $region48: #{tpu_custom_call.1} parent=11 // pred_fallthru
          _
        // Predicated region
        $region49: #{tpu_custom_call.1} parent=11 // pred_check
          %p346 = pneg %p258
        $region50: #{tpu_custom_call.1} parent=11 // pred_check_branch
          %348 = sbr.rel (%p346) target = $region52
        $region51: #{tpu_custom_call.1} parent=11 // pred_region
          _
        $region52: #{tpu_custom_call.1} parent=11 // pred_fallthru
          _
      $region12: #{tpu_custom_call.1} parent=5 // pred_fallthru
        _
      %p349 = scmp.lt.s32.totalorder %s22, 2
      // Predicated region
      $region53: #{tpu_custom_call.1} parent=5 // pred_check
        %p350 = pneg %p349
      $region54: #{tpu_custom_call.1} parent=5 // pred_check_branch
        %352 = sbr.rel (%p350) target = $region56
      $region55: #{tpu_custom_call.1} parent=5 // pred_region
        // Predicated region
        $region57: #{tpu_custom_call.1} parent=55 // pred_check
          %p353 = pneg %p42
        $region58: #{tpu_custom_call.1} parent=55 // pred_check_branch
          %355 = sbr.rel (%p353) target = $region60
        $region59: #{tpu_custom_call.1} parent=55 // pred_region
          %s356 = smul.u32 16, %s22
          %p357 = scmp.lt.s32.totalorder %s356, 31
          %s358 = scalar_select %p357, %s356, 31
          %s359 = smul.addr %s358, 8
          %s360 = scalar_lea.vmem %s0, %s359
          %s361 = smul.u32 16, %s22
        $region60: #{tpu_custom_call.1} parent=55 // pred_fallthru
          _
      $region56: #{tpu_custom_call.1} parent=5 // pred_fallthru
        _
      %p362 = scmp.le.s32.totalorder 1, %s22
      %p363 = scmp.lt.s32.totalorder %s22, 3
      %p364 = pnand %p362, %p363
      %p365 = pneg %p364
      // Predicated region
      $region61: #{tpu_custom_call.1} parent=5 // pred_check
        _
      $region62: #{tpu_custom_call.1} parent=5 // pred_check_branch
        %367 = sbr.rel (%p364) target = $region64
      $region63: #{tpu_custom_call.1} parent=5 // pred_region
        %s368 = ssub.s32 %s22, 1
        // Predicated region
        $region65: #{tpu_custom_call.1} parent=63 // pred_check
          %p369 = pneg %p153
        $region66: #{tpu_custom_call.1} parent=63 // pred_check_branch
          %371 = sbr.rel (%p369) target = $region68
        $region67: #{tpu_custom_call.1} parent=63 // pred_region
          %372 = dma.done [#allocation3], 8192
        $region68: #{tpu_custom_call.1} parent=63 // pred_fallthru
          _
        // Predicated region
        $region69: #{tpu_custom_call.1} parent=63 // pred_check
          %p373 = pneg %p195
        $region70: #{tpu_custom_call.1} parent=63 // pred_check_branch
          %375 = sbr.rel (%p373) target = $region72
        $region71: #{tpu_custom_call.1} parent=63 // pred_region
          %376 = dma.done [#allocation6], 8192
        $region72: #{tpu_custom_call.1} parent=63 // pred_fallthru
          _
        %s377 = smul.u32 16, %s27
        %p378 = scmp.lt.s32.totalorder %s377, 31
        %s379 = scalar_select %p378, %s377, 31
        %s380 = smul.addr %s379, 8
        %s381 = scalar_lea.vmem %s0, %s380
        %p382 = pneg %p48
        %p383 = pneg %p45
        %p384 = pneg %p69
        %p385 = pneg %p66
        %p386 = pneg %p90
        %p387 = pneg %p87
        %p388 = pneg %p111
        %p389 = pneg %p108
        %p390 = pneg %p132
        %p391 = pneg %p129
        %p392 = pneg %p153
        %p393 = pneg %p150
        %p394 = pneg %p174
        %p395 = pneg %p171
        %p396 = pneg %p195
        %p397 = pneg %p192
        %p398 = pneg %p216
        %p399 = pneg %p213
        %p400 = pneg %p237
        %p401 = pneg %p234
        %p402 = pneg %p258
        %p403 = pneg %p255
        %p404 = pneg %p284
        %p405 = pneg %p281
        %s406 = sand.u32 %s271, 1
        %s407 = scalar_lea.sflag [#allocation4], %s406
        %s408 = sand.u32 %s271, 1
        %s409 = smul.addr %s408, 128
        %s410 = scalar_lea.vmem [#allocation7], %s409
        %s411 = smul.u32 16, %s27
        %p412 = scmp.lt.s32.totalorder %s411, 31
        %s413 = scalar_select %p412, %s411, 31
        %s414 = smul.addr %s413, 8
        %s415 = scalar_lea.vmem %s0, %s414
        %s416 = smul.u32 16, %s27
        %s417 = smul.u32 16, %s27
        %v419 = vld [vmem:[%s415] sm:$0xff]
        %v420 = vld [vmem:[%s415 + $0x8] sm:$0xff]
        %v421 = vld [vmem:[%s415 + $0x10] sm:$0xff]
        %v422 = vld [vmem:[%s415 + $0x18] sm:$0xff]
        %v423 = vld [vmem:[%s415 + $0x20] sm:$0xff]
        %v424 = vld [vmem:[%s415 + $0x28] sm:$0xff]
        %v425 = vld [vmem:[%s415 + $0x30] sm:$0xff]
        %v426 = vld [vmem:[%s415 + $0x38] sm:$0xff]
        %v427 = vld [vmem:[%s415 + $0x40] sm:$0xff]
        %v428 = vld [vmem:[%s415 + $0x48] sm:$0xff]
        %v429 = vld [vmem:[%s415 + $0x50] sm:$0xff]
        %v430 = vld [vmem:[%s415 + $0x58] sm:$0xff]
        %v431 = vld [vmem:[%s415 + $0x60] sm:$0xff]
        %v432 = vld [vmem:[%s415 + $0x68] sm:$0xff]
        %v433 = vld [vmem:[%s415 + $0x70] sm:$0xff]
        %v434 = vld [vmem:[%s415 + $0x78] sm:$0xff]
        %v435 = vpack.c.bf16 %v420, %v419
        %v436 = vpack.c.bf16 %v422, %v421
        %v437 = vpack.c.bf16 %v424, %v423
        %v438 = vpack.c.bf16 %v426, %v425
        %v439 = vpack.c.bf16 %v428, %v427
        %v440 = vpack.c.bf16 %v430, %v429
        %v441 = vpack.c.bf16 %v432, %v431
        %v442 = vpack.c.bf16 %v434, %v433
        %v443 = vld [vmem:[%s1] sm:$0xf]
        %v444 = vld [vmem:[%s1 + $0x4] sm:$0xf]
        %v445 = vld [vmem:[%s1 + $0x8] sm:$0xf]
        %v446 = vld [vmem:[%s1 + $0xc] sm:$0xf]
        %v447 = vld [vmem:[%s2] sm:$0x1]
        %v449 = vlaneseq
        %v450 = vshrl.u32 %v449, 7
        %v451 = vsub.s32 0, %v450
        %v452 = vrot.slane %v447, %v451
        %v458 = vunpack.c.l.b16 %v443
        %v459 = vunpack.c.l.b16 %v444
        %v460 = vunpack.c.l.b16 %v445
        %v461 = vunpack.c.l.b16 %v446
        %v462 = vpack.c.b16 %v459, %v458
        %v463 = vpack.c.b16 %v461, %v460
        %vm466 = vcmask 261120
        %v468 = vsel %vm466, %v435, 0
        %v471 = vsel %vm466, %v436, 0
        %v474 = vsel %vm466, %v437, 0
        %v477 = vsel %vm466, %v438, 0
        %v480 = vsel %vm466, %v439, 0
        %v483 = vsel %vm466, %v440, 0
        %v486 = vsel %vm466, %v441, 0
        %v489 = vsel %vm466, %v442, 0
        %491 = vmatprep.subr.bf16.mxu0 0
        %492 = vmatpush1.bf16.msra.mxu0 %v462
        %493 = vmatprep.subr.bf16.mxu0 0
        %494 = vmatpush1.bf16.msra.mxu0 %v463
        %495 = vmatprep.subr.bf16.mxu0 0
        %496 = vmatpush1.bf16.msra.mxu0 0
        %497 = vmatprep.subr.bf16.mxu0 0
        %498 = vmatpush1.bf16.msra.mxu0 0
        %499 = vmatprep.subr.bf16.mxu0 0
        %500 = vmatpush1.bf16.msra.mxu0 0
        %501 = vmatprep.subr.bf16.mxu0 0
        %502 = vmatpush1.bf16.msra.mxu0 0
        %503 = vmatprep.subr.bf16.mxu0 0
        %504 = vmatpush1.bf16.msra.mxu0 0
        %505 = vmatprep.subr.bf16.mxu0 0
        %506 = vmatpush1.bf16.msra.mxu0 0
        %507 = vmatprep.subr.bf16.mxu0 0
        %508 = vmatpush1.bf16.msra.mxu0 0
        %509 = vmatprep.subr.bf16.mxu0 0
        %510 = vmatpush1.bf16.msra.mxu0 0
        %511 = vmatprep.subr.bf16.mxu0 0
        %512 = vmatpush1.bf16.msra.mxu0 0
        %513 = vmatprep.subr.bf16.mxu0 0
        %514 = vmatpush1.bf16.msra.mxu0 0
        %515 = vmatprep.subr.bf16.mxu0 0
        %516 = vmatpush1.bf16.msra.mxu0 0
        %517 = vmatprep.subr.bf16.mxu0 0
        %518 = vmatpush1.bf16.msra.mxu0 0
        %519 = vmatprep.subr.bf16.mxu0 0
        %520 = vmatpush1.bf16.msra.mxu0 0
        %521 = vmatprep.subr.bf16.mxu0 0
        %522 = vmatpush1.bf16.msra.mxu0 0
        %523 = vmatprep.mubr.bf16.mxu0 0
        %524 = vmatmul.mubr.bf16.gmra.mrb[0].mxu0 %v468
        %v525 = vpop.f32.mrb[0].mxu0
        %v526 = vadd.f32 %v452, %v525
        %v527 = vpop.f32.mrb[0].mxu0
        %v528 = vpop.f32.mrb[0].mxu0
        %v529 = vadd.f32 %v452, %v528
        %v530 = vpop.f32.mrb[0].mxu0
        %531 = vmatprep.mubr.bf16.mxu0 0
        %532 = vmatmul.mubr.bf16.gmra.mrb[0].mxu0 %v471
        %v533 = vpop.f32.mrb[0].mxu0
        %v534 = vadd.f32 %v452, %v533
        %v535 = vpop.f32.mrb[0].mxu0
        %v536 = vpop.f32.mrb[0].mxu0
        %v537 = vadd.f32 %v452, %v536
        %v538 = vpop.f32.mrb[0].mxu0
        %539 = vmatprep.mubr.bf16.mxu0 0
        %540 = vmatmul.mubr.bf16.gmra.mrb[0].mxu0 %v474
        %v541 = vpop.f32.mrb[0].mxu0
        %v542 = vadd.f32 %v452, %v541
        %v543 = vpop.f32.mrb[0].mxu0
        %v544 = vpop.f32.mrb[0].mxu0
        %v545 = vadd.f32 %v452, %v544
        %v546 = vpop.f32.mrb[0].mxu0
        %547 = vmatprep.mubr.bf16.mxu0 0
        %548 = vmatmul.mubr.bf16.gmra.mrb[0].mxu0 %v477
        %v549 = vpop.f32.mrb[0].mxu0
        %v550 = vadd.f32 %v452, %v549
        %v551 = vpop.f32.mrb[0].mxu0
        %v552 = vpop.f32.mrb[0].mxu0
        %v553 = vadd.f32 %v452, %v552
        %v554 = vpop.f32.mrb[0].mxu0
        %555 = vmatprep.mubr.bf16.mxu0 0
        %556 = vmatmul.mubr.bf16.gmra.mrb[0].mxu0 %v480
        %v557 = vpop.f32.mrb[0].mxu0
        %v558 = vadd.f32 %v452, %v557
        %v559 = vpop.f32.mrb[0].mxu0
        %v560 = vpop.f32.mrb[0].mxu0
        %v561 = vadd.f32 %v452, %v560
        %v562 = vpop.f32.mrb[0].mxu0
        %563 = vmatprep.mubr.bf16.mxu0 0
        %564 = vmatmul.mubr.bf16.gmra.mrb[0].mxu0 %v483
        %v565 = vpop.f32.mrb[0].mxu0
        %v566 = vadd.f32 %v452, %v565
        %v567 = vpop.f32.mrb[0].mxu0
        %v568 = vpop.f32.mrb[0].mxu0
        %v569 = vadd.f32 %v452, %v568
        %v570 = vpop.f32.mrb[0].mxu0
        %571 = vmatprep.mubr.bf16.mxu0 0
        %572 = vmatmul.mubr.bf16.gmra.mrb[0].mxu0 %v486
        %v573 = vpop.f32.mrb[0].mxu0
        %v574 = vadd.f32 %v452, %v573
        %v575 = vpop.f32.mrb[0].mxu0
        %v576 = vpop.f32.mrb[0].mxu0
        %v577 = vadd.f32 %v452, %v576
        %v578 = vpop.f32.mrb[0].mxu0
        %579 = vmatprep.mubr.bf16.mxu0 0
        %580 = vmatmul.mubr.bf16.gmra.mrb[0].mxu0 %v489
        %v581 = vpop.f32.mrb[0].mxu0
        %v582 = vadd.f32 %v452, %v581
        %v583 = vpop.f32.mrb[0].mxu0
        %v584 = vpop.f32.mrb[0].mxu0
        %v585 = vadd.f32 %v452, %v584
        %v586 = vpop.f32.mrb[0].mxu0
        %587 = vdwg.mxu0
        %v588 = vmax.f32 %v526, 0.0
        %v589 = vmax.f32 %v529, 0.0
        %v590 = vmax.f32 %v534, 0.0
        %v591 = vmax.f32 %v537, 0.0
        %v592 = vmax.f32 %v542, 0.0
        %v593 = vmax.f32 %v545, 0.0
        %v594 = vmax.f32 %v550, 0.0
        %v595 = vmax.f32 %v553, 0.0
        %v596 = vmax.f32 %v558, 0.0
        %v597 = vmax.f32 %v561, 0.0
        %v598 = vmax.f32 %v566, 0.0
        %v599 = vmax.f32 %v569, 0.0
        %v600 = vmax.f32 %v574, 0.0
        %v601 = vmax.f32 %v577, 0.0
        %v602 = vmax.f32 %v582, 0.0
        %v603 = vmax.f32 %v585, 0.0
        %v604 = vpack.c.bf16 %v589, %v588
        %v605 = vpack.c.bf16 %v591, %v590
        %v606 = vpack.c.bf16 %v593, %v592
        %v607 = vpack.c.bf16 %v595, %v594
        %v608 = vpack.c.bf16 %v597, %v596
        %v609 = vpack.c.bf16 %v599, %v598
        %v610 = vpack.c.bf16 %v601, %v600
        %v611 = vpack.c.bf16 %v603, %v602
        %v612 = vld [vmem:[%s3] sm:$0xff]
        %v613 = vld [vmem:[%s3 + $0x8] sm:$0xff]
        %v614 = vld [vmem:[%s3 + $0x10] sm:$0xff]
        %v615 = vld [vmem:[%s3 + $0x18] sm:$0xff]
        %v616 = vld [vmem:[%s3 + $0x20] sm:$0xff]
        %v617 = vld [vmem:[%s3 + $0x28] sm:$0xff]
        %v618 = vld [vmem:[%s3 + $0x30] sm:$0xff]
        %v619 = vld [vmem:[%s3 + $0x38] sm:$0xff]
        %v620 = vld [vmem:[%s4] sm:$0x3]
        %v622 = vlaneseq
        %v623 = vshrl.u32 %v622, 7
        %v624 = vsub.s32 0, %v623
        %v625 = vrot.slane %v620, %v624
        %v626 = vlaneseq
        %v627 = vshrl.u32 %v626, 7
        %v628 = vsub.s32 1, %v627
        %v629 = vrot.slane %v620, %v628
        %v640 = vunpack.c.l.b16 %v612
        %v641 = vunpack.c.h.b16 %v612
        %v642 = vunpack.c.l.b16 %v613
        %v643 = vunpack.c.h.b16 %v613
        %v644 = vunpack.c.l.b16 %v614
        %v645 = vunpack.c.h.b16 %v614
        %v646 = vunpack.c.l.b16 %v615
        %v647 = vunpack.c.h.b16 %v615
        %v648 = vunpack.c.l.b16 %v616
        %v649 = vunpack.c.h.b16 %v616
        %v650 = vunpack.c.l.b16 %v617
        %v651 = vunpack.c.h.b16 %v617
        %v652 = vunpack.c.l.b16 %v618
        %v653 = vunpack.c.h.b16 %v618
        %v654 = vunpack.c.l.b16 %v619
        %v655 = vunpack.c.h.b16 %v619
        %v656 = vpack.c.b16 %v642, %v640
        %v657 = vpack.c.b16 %v643, %v641
        %v658 = vpack.c.b16 %v646, %v644
        %v659 = vpack.c.b16 %v647, %v645
        %v660 = vpack.c.b16 %v650, %v648
        %v661 = vpack.c.b16 %v651, %v649
        %v662 = vpack.c.b16 %v654, %v652
        %v663 = vpack.c.b16 %v655, %v653
        %vm672 = vcmask 523264
        %v674 = vsel %vm672, %v604, 0
        %v677 = vsel %vm672, %v605, 0
        %v680 = vsel %vm672, %v606, 0
        %v683 = vsel %vm672, %v607, 0
        %v686 = vsel %vm672, %v608, 0
        %v689 = vsel %vm672, %v609, 0
        %v692 = vsel %vm672, %v610, 0
        %v695 = vsel %vm672, %v611, 0
        %697 = vmatprep.subr.bf16.mxu0 %v657
        %698 = vmatpush1.bf16.msra.mxu0 %v656
        %699 = vmatprep.subr.bf16.mxu0 %v659
        %700 = vmatpush1.bf16.msra.mxu0 %v658
        %701 = vmatprep.subr.bf16.mxu0 %v661
        %702 = vmatpush1.bf16.msra.mxu0 %v660
        %703 = vmatprep.subr.bf16.mxu0 %v663
        %704 = vmatpush1.bf16.msra.mxu0 %v662
        %705 = vmatprep.subr.bf16.mxu0 0
        %706 = vmatpush1.bf16.msra.mxu0 0
        %707 = vmatprep.subr.bf16.mxu0 0
        %708 = vmatpush1.bf16.msra.mxu0 0
        %709 = vmatprep.subr.bf16.mxu0 0
        %710 = vmatpush1.bf16.msra.mxu0 0
        %711 = vmatprep.subr.bf16.mxu0 0
        %712 = vmatpush1.bf16.msra.mxu0 0
        %713 = vmatprep.subr.bf16.mxu0 0
        %714 = vmatpush1.bf16.msra.mxu0 0
        %715 = vmatprep.subr.bf16.mxu0 0
        %716 = vmatpush1.bf16.msra.mxu0 0
        %717 = vmatprep.subr.bf16.mxu0 0
        %718 = vmatpush1.bf16.msra.mxu0 0
        %719 = vmatprep.subr.bf16.mxu0 0
        %720 = vmatpush1.bf16.msra.mxu0 0
        %721 = vmatprep.subr.bf16.mxu0 0
        %722 = vmatpush1.bf16.msra.mxu0 0
        %723 = vmatprep.subr.bf16.mxu0 0
        %724 = vmatpush1.bf16.msra.mxu0 0
        %725 = vmatprep.subr.bf16.mxu0 0
        %726 = vmatpush1.bf16.msra.mxu0 0
        %727 = vmatprep.subr.bf16.mxu0 0
        %728 = vmatpush1.bf16.msra.mxu0 0
        %729 = vmatprep.mubr.bf16.mxu0 0
        %730 = vmatmul.mubr.bf16.gmra.mrb[0].mxu0 %v674
        %v731 = vpop.f32.mrb[0].mxu0
        %v732 = vadd.f32 %v625, %v731
        %v733 = vpop.f32.mrb[0].mxu0
        %v734 = vadd.f32 %v629, %v733
        %v735 = vpop.f32.mrb[0].mxu0
        %v736 = vadd.f32 %v625, %v735
        %v737 = vpop.f32.mrb[0].mxu0
        %v738 = vadd.f32 %v629, %v737
        %739 = vmatprep.mubr.bf16.mxu0 0
        %740 = vmatmul.mubr.bf16.gmra.mrb[0].mxu0 %v677
        %v741 = vpop.f32.mrb[0].mxu0
        %v742 = vadd.f32 %v625, %v741
        %v743 = vpop.f32.mrb[0].mxu0
        %v744 = vadd.f32 %v629, %v743
        %v745 = vpop.f32.mrb[0].mxu0
        %v746 = vadd.f32 %v625, %v745
        %v747 = vpop.f32.mrb[0].mxu0
        %v748 = vadd.f32 %v629, %v747
        %749 = vmatprep.mubr.bf16.mxu0 0
        %750 = vmatmul.mubr.bf16.gmra.mrb[0].mxu0 %v680
        %v751 = vpop.f32.mrb[0].mxu0
        %v752 = vadd.f32 %v625, %v751
        %v753 = vpop.f32.mrb[0].mxu0
        %v754 = vadd.f32 %v629, %v753
        %v755 = vpop.f32.mrb[0].mxu0
        %v756 = vadd.f32 %v625, %v755
        %v757 = vpop.f32.mrb[0].mxu0
        %v758 = vadd.f32 %v629, %v757
        %759 = vmatprep.mubr.bf16.mxu0 0
        %760 = vmatmul.mubr.bf16.gmra.mrb[0].mxu0 %v683
        %v761 = vpop.f32.mrb[0].mxu0
        %v762 = vadd.f32 %v625, %v761
        %v763 = vpop.f32.mrb[0].mxu0
        %v764 = vadd.f32 %v629, %v763
        %v765 = vpop.f32.mrb[0].mxu0
        %v766 = vadd.f32 %v625, %v765
        %v767 = vpop.f32.mrb[0].mxu0
        %v768 = vadd.f32 %v629, %v767
        %769 = vmatprep.mubr.bf16.mxu0 0
        %770 = vmatmul.mubr.bf16.gmra.mrb[0].mxu0 %v686
        %v771 = vpop.f32.mrb[0].mxu0
        %v772 = vadd.f32 %v625, %v771
        %v773 = vpop.f32.mrb[0].mxu0
        %v774 = vadd.f32 %v629, %v773
        %v775 = vpop.f32.mrb[0].mxu0
        %v776 = vadd.f32 %v625, %v775
        %v777 = vpop.f32.mrb[0].mxu0
        %v778 = vadd.f32 %v629, %v777
        %779 = vmatprep.mubr.bf16.mxu0 0
        %780 = vmatmul.mubr.bf16.gmra.mrb[0].mxu0 %v689
        %v781 = vpop.f32.mrb[0].mxu0
        %v782 = vadd.f32 %v625, %v781
        %v783 = vpop.f32.mrb[0].mxu0
        %v784 = vadd.f32 %v629, %v783
        %v785 = vpop.f32.mrb[0].mxu0
        %v786 = vadd.f32 %v625, %v785
        %v787 = vpop.f32.mrb[0].mxu0
        %v788 = vadd.f32 %v629, %v787
        %789 = vmatprep.mubr.bf16.mxu0 0
        %790 = vmatmul.mubr.bf16.gmra.mrb[0].mxu0 %v692
        %v791 = vpop.f32.mrb[0].mxu0
        %v792 = vadd.f32 %v625, %v791
        %v793 = vpop.f32.mrb[0].mxu0
        %v794 = vadd.f32 %v629, %v793
        %v795 = vpop.f32.mrb[0].mxu0
        %v796 = vadd.f32 %v625, %v795
        %v797 = vpop.f32.mrb[0].mxu0
        %v798 = vadd.f32 %v629, %v797
        %799 = vmatprep.mubr.bf16.mxu0 0
        %800 = vmatmul.mubr.bf16.gmra.mrb[0].mxu0 %v695
        %v801 = vpop.f32.mrb[0].mxu0
        %v802 = vadd.f32 %v625, %v801
        %v803 = vpop.f32.mrb[0].mxu0
        %v804 = vadd.f32 %v629, %v803
        %v805 = vpop.f32.mrb[0].mxu0
        %v806 = vadd.f32 %v625, %v805
        %v807 = vpop.f32.mrb[0].mxu0
        %v808 = vadd.f32 %v629, %v807
        %809 = vdwg.mxu0
        %v810 = vmax.f32 %v732, 0.0
        %v811 = vmax.f32 %v734, 0.0
        %v812 = vmax.f32 %v736, 0.0
        %v813 = vmax.f32 %v738, 0.0
        %v814 = vmax.f32 %v742, 0.0
        %v815 = vmax.f32 %v744, 0.0
        %v816 = vmax.f32 %v746, 0.0
        %v817 = vmax.f32 %v748, 0.0
        %v818 = vmax.f32 %v752, 0.0
        %v819 = vmax.f32 %v754, 0.0
        %v820 = vmax.f32 %v756, 0.0
        %v821 = vmax.f32 %v758, 0.0
        %v822 = vmax.f32 %v762, 0.0
        %v823 = vmax.f32 %v764, 0.0
        %v824 = vmax.f32 %v766, 0.0
        %v825 = vmax.f32 %v768, 0.0
        %v826 = vmax.f32 %v772, 0.0
        %v827 = vmax.f32 %v774, 0.0
        %v828 = vmax.f32 %v776, 0.0
        %v829 = vmax.f32 %v778, 0.0
        %v830 = vmax.f32 %v782, 0.0
        %v831 = vmax.f32 %v784, 0.0
        %v832 = vmax.f32 %v786, 0.0
        %v833 = vmax.f32 %v788, 0.0
        %v834 = vmax.f32 %v792, 0.0
        %v835 = vmax.f32 %v794, 0.0
        %v836 = vmax.f32 %v796, 0.0
        %v837 = vmax.f32 %v798, 0.0
        %v838 = vmax.f32 %v802, 0.0
        %v839 = vmax.f32 %v804, 0.0
        %v840 = vmax.f32 %v806, 0.0
        %v841 = vmax.f32 %v808, 0.0
        %v842 = vpack.c.bf16 %v812, %v810
        %v843 = vpack.c.bf16 %v813, %v811
        %v844 = vpack.c.bf16 %v816, %v814
        %v845 = vpack.c.bf16 %v817, %v815
        %v846 = vpack.c.bf16 %v820, %v818
        %v847 = vpack.c.bf16 %v821, %v819
        %v848 = vpack.c.bf16 %v824, %v822
        %v849 = vpack.c.bf16 %v825, %v823
        %v850 = vpack.c.bf16 %v828, %v826
        %v851 = vpack.c.bf16 %v829, %v827
        %v852 = vpack.c.bf16 %v832, %v830
        %v853 = vpack.c.bf16 %v833, %v831
        %v854 = vpack.c.bf16 %v836, %v834
        %v855 = vpack.c.bf16 %v837, %v835
        %v856 = vpack.c.bf16 %v840, %v838
        %v857 = vpack.c.bf16 %v841, %v839
        %v858 = vld [vmem:[#allocation2] sm:$0xff]
        %v859 = vld [vmem:[#allocation2 + $0x8] sm:$0xff]
        %v860 = vld [vmem:[#allocation2 + $0x10] sm:$0xff]
        %v861 = vld [vmem:[#allocation2 + $0x18] sm:$0xff]
        %v862 = vld [vmem:[#allocation2 + $0x20] sm:$0xff]
        %v863 = vld [vmem:[#allocation2 + $0x28] sm:$0xff]
        %v864 = vld [vmem:[#allocation2 + $0x30] sm:$0xff]
        %v865 = vld [vmem:[#allocation2 + $0x38] sm:$0xff]
        %v866 = vld [vmem:[#allocation2 + $0x40] sm:$0xff]
        %v867 = vld [vmem:[#allocation2 + $0x48] sm:$0xff]
        %v868 = vld [vmem:[#allocation2 + $0x50] sm:$0xff]
        %v869 = vld [vmem:[#allocation2 + $0x58] sm:$0xff]
        %v870 = vld [vmem:[#allocation2 + $0x60] sm:$0xff]
        %v871 = vld [vmem:[#allocation2 + $0x68] sm:$0xff]
        %v872 = vld [vmem:[#allocation2 + $0x70] sm:$0xff]
        %v873 = vld [vmem:[#allocation2 + $0x78] sm:$0xff]
        %v874 = vld [vmem:[#allocation2 + $0x80] sm:$0xff]
        %v875 = vld [vmem:[#allocation2 + $0x88] sm:$0xff]
        %v876 = vld [vmem:[#allocation2 + $0x90] sm:$0xff]
        %v877 = vld [vmem:[#allocation2 + $0x98] sm:$0xff]
        %v878 = vld [vmem:[#allocation2 + $0xa0] sm:$0xff]
        %v879 = vld [vmem:[#allocation2 + $0xa8] sm:$0xff]
        %v880 = vld [vmem:[#allocation2 + $0xb0] sm:$0xff]
        %v881 = vld [vmem:[#allocation2 + $0xb8] sm:$0xff]
        %v882 = vld [vmem:[#allocation2 + $0xc0] sm:$0xff]
        %v883 = vld [vmem:[#allocation2 + $0xc8] sm:$0xff]
        %v884 = vld [vmem:[#allocation2 + $0xd0] sm:$0xff]
        %v885 = vld [vmem:[#allocation2 + $0xd8] sm:$0xff]
        %v886 = vld [vmem:[#allocation2 + $0xe0] sm:$0xff]
        %v887 = vld [vmem:[#allocation2 + $0xe8] sm:$0xff]
        %v888 = vld [vmem:[#allocation2 + $0xf0] sm:$0xff]
        %v889 = vld [vmem:[#allocation2 + $0xf8] sm:$0xff]
        %v890 = vld [vmem:[#allocation2 + $0x100] sm:$0xff]
        %v891 = vld [vmem:[#allocation2 + $0x108] sm:$0xff]
        %v892 = vld [vmem:[#allocation2 + $0x110] sm:$0xff]
        %v893 = vld [vmem:[#allocation2 + $0x118] sm:$0xff]
        %v894 = vld [vmem:[#allocation2 + $0x120] sm:$0xff]
        %v895 = vld [vmem:[#allocation2 + $0x128] sm:$0xff]
        %v896 = vld [vmem:[#allocation2 + $0x130] sm:$0xff]
        %v897 = vld [vmem:[#allocation2 + $0x138] sm:$0xff]
        %v898 = vld [vmem:[#allocation2 + $0x140] sm:$0xff]
        %v899 = vld [vmem:[#allocation2 + $0x148] sm:$0xff]
        %v900 = vld [vmem:[#allocation2 + $0x150] sm:$0xff]
        %v901 = vld [vmem:[#allocation2 + $0x158] sm:$0xff]
        %v902 = vld [vmem:[#allocation2 + $0x160] sm:$0xff]
        %v903 = vld [vmem:[#allocation2 + $0x168] sm:$0xff]
        %v904 = vld [vmem:[#allocation2 + $0x170] sm:$0xff]
        %v905 = vld [vmem:[#allocation2 + $0x178] sm:$0xff]
        %v906 = vld [vmem:[#allocation2 + $0x180] sm:$0xff]
        %v907 = vld [vmem:[#allocation2 + $0x188] sm:$0xff]
        %v908 = vld [vmem:[#allocation2 + $0x190] sm:$0xff]
        %v909 = vld [vmem:[#allocation2 + $0x198] sm:$0xff]
        %v910 = vld [vmem:[#allocation2 + $0x1a0] sm:$0xff]
        %v911 = vld [vmem:[#allocation2 + $0x1a8] sm:$0xff]
        %v912 = vld [vmem:[#allocation2 + $0x1b0] sm:$0xff]
        %v913 = vld [vmem:[#allocation2 + $0x1b8] sm:$0xff]
        %v914 = vld [vmem:[#allocation2 + $0x1c0] sm:$0xff]
        %v915 = vld [vmem:[#allocation2 + $0x1c8] sm:$0xff]
        %v916 = vld [vmem:[#allocation2 + $0x1d0] sm:$0xff]
        %v917 = vld [vmem:[#allocation2 + $0x1d8] sm:$0xff]
        %v918 = vld [vmem:[#allocation2 + $0x1e0] sm:$0xff]
        %v919 = vld [vmem:[#allocation2 + $0x1e8] sm:$0xff]
        %v920 = vld [vmem:[#allocation2 + $0x1f0] sm:$0xff]
        %v921 = vld [vmem:[#allocation2 + $0x1f8] sm:$0xff]
        %v922 = vld [vmem:[%s6] sm:$0xf]
        %v924 = vlaneseq
        %v925 = vshrl.u32 %v924, 7
        %v926 = vsub.s32 0, %v925
        %v927 = vrot.slane %v922, %v926
        %v928 = vlaneseq
        %v929 = vshrl.u32 %v928, 7
        %v930 = vsub.s32 1, %v929
        %v931 = vrot.slane %v922, %v930
        %v932 = vlaneseq
        %v933 = vshrl.u32 %v932, 7
        %v934 = vsub.s32 2, %v933
        %v935 = vrot.slane %v922, %v934
        %v936 = vlaneseq
        %v937 = vshrl.u32 %v936, 7
        %v938 = vsub.s32 3, %v937
        %v939 = vrot.slane %v922, %v938
        %v1008 = vunpack.c.l.b16 %v858
        %v1009 = vunpack.c.h.b16 %v858
        %v1010 = vunpack.c.l.b16 %v859
        %v1011 = vunpack.c.h.b16 %v859
        %v1012 = vunpack.c.l.b16 %v860
        %v1013 = vunpack.c.h.b16 %v860
        %v1014 = vunpack.c.l.b16 %v861
        %v1015 = vunpack.c.h.b16 %v861
        %v1016 = vunpack.c.l.b16 %v862
        %v1017 = vunpack.c.h.b16 %v862
        %v1018 = vunpack.c.l.b16 %v863
        %v1019 = vunpack.c.h.b16 %v863
        %v1020 = vunpack.c.l.b16 %v864
        %v1021 = vunpack.c.h.b16 %v864
        %v1022 = vunpack.c.l.b16 %v865
        %v1023 = vunpack.c.h.b16 %v865
        %v1024 = vunpack.c.l.b16 %v866
        %v1025 = vunpack.c.h.b16 %v866
        %v1026 = vunpack.c.l.b16 %v867
        %v1027 = vunpack.c.h.b16 %v867
        %v1028 = vunpack.c.l.b16 %v868
        %v1029 = vunpack.c.h.b16 %v868
        %v1030 = vunpack.c.l.b16 %v869
        %v1031 = vunpack.c.h.b16 %v869
        %v1032 = vunpack.c.l.b16 %v870
        %v1033 = vunpack.c.h.b16 %v870
        %v1034 = vunpack.c.l.b16 %v871
        %v1035 = vunpack.c.h.b16 %v871
        %v1036 = vunpack.c.l.b16 %v872
        %v1037 = vunpack.c.h.b16 %v872
        %v1038 = vunpack.c.l.b16 %v873
        %v1039 = vunpack.c.h.b16 %v873
        %v1040 = vunpack.c.l.b16 %v874
        %v1041 = vunpack.c.h.b16 %v874
        %v1042 = vunpack.c.l.b16 %v875
        %v1043 = vunpack.c.h.b16 %v875
        %v1044 = vunpack.c.l.b16 %v876
        %v1045 = vunpack.c.h.b16 %v876
        %v1046 = vunpack.c.l.b16 %v877
        %v1047 = vunpack.c.h.b16 %v877
        %v1048 = vunpack.c.l.b16 %v878
        %v1049 = vunpack.c.h.b16 %v878
        %v1050 = vunpack.c.l.b16 %v879
        %v1051 = vunpack.c.h.b16 %v879
        %v1052 = vunpack.c.l.b16 %v880
        %v1053 = vunpack.c.h.b16 %v880
        %v1054 = vunpack.c.l.b16 %v881
        %v1055 = vunpack.c.h.b16 %v881
        %v1056 = vunpack.c.l.b16 %v882
        %v1057 = vunpack.c.h.b16 %v882
        %v1058 = vunpack.c.l.b16 %v883
        %v1059 = vunpack.c.h.b16 %v883
        %v1060 = vunpack.c.l.b16 %v884
        %v1061 = vunpack.c.h.b16 %v884
        %v1062 = vunpack.c.l.b16 %v885
        %v1063 = vunpack.c.h.b16 %v885
        %v1064 = vunpack.c.l.b16 %v886
        %v1065 = vunpack.c.h.b16 %v886
        %v1066 = vunpack.c.l.b16 %v887
        %v1067 = vunpack.c.h.b16 %v887
        %v1068 = vunpack.c.l.b16 %v888
        %v1069 = vunpack.c.h.b16 %v888
        %v1070 = vunpack.c.l.b16 %v889
        %v1071 = vunpack.c.h.b16 %v889
        %v1072 = vunpack.c.l.b16 %v890
        %v1073 = vunpack.c.h.b16 %v890
        %v1074 = vunpack.c.l.b16 %v891
        %v1075 = vunpack.c.h.b16 %v891
        %v1076 = vunpack.c.l.b16 %v892
        %v1077 = vunpack.c.h.b16 %v892
        %v1078 = vunpack.c.l.b16 %v893
        %v1079 = vunpack.c.h.b16 %v893
        %v1080 = vunpack.c.l.b16 %v894
        %v1081 = vunpack.c.h.b16 %v894
        %v1082 = vunpack.c.l.b16 %v895
        %v1083 = vunpack.c.h.b16 %v895
        %v1084 = vunpack.c.l.b16 %v896
        %v1085 = vunpack.c.h.b16 %v896
        %v1086 = vunpack.c.l.b16 %v897
        %v1087 = vunpack.c.h.b16 %v897
        %v1088 = vunpack.c.l.b16 %v898
        %v1089 = vunpack.c.h.b16 %v898
        %v1090 = vunpack.c.l.b16 %v899
        %v1091 = vunpack.c.h.b16 %v899
        %v1092 = vunpack.c.l.b16 %v900
        %v1093 = vunpack.c.h.b16 %v900
        %v1094 = vunpack.c.l.b16 %v901
        %v1095 = vunpack.c.h.b16 %v901
        %v1096 = vunpack.c.l.b16 %v902
        %v1097 = vunpack.c.h.b16 %v902
        %v1098 = vunpack.c.l.b16 %v903
        %v1099 = vunpack.c.h.b16 %v903
        %v1100 = vunpack.c.l.b16 %v904
        %v1101 = vunpack.c.h.b16 %v904
        %v1102 = vunpack.c.l.b16 %v905
        %v1103 = vunpack.c.h.b16 %v905
        %v1104 = vunpack.c.l.b16 %v906
        %v1105 = vunpack.c.h.b16 %v906
        %v1106 = vunpack.c.l.b16 %v907
        %v1107 = vunpack.c.h.b16 %v907
        %v1108 = vunpack.c.l.b16 %v908
        %v1109 = vunpack.c.h.b16 %v908
        %v1110 = vunpack.c.l.b16 %v909
        %v1111 = vunpack.c.h.b16 %v909
        %v1112 = vunpack.c.l.b16 %v910
        %v1113 = vunpack.c.h.b16 %v910
        %v1114 = vunpack.c.l.b16 %v911
        %v1115 = vunpack.c.h.b16 %v911
        %v1116 = vunpack.c.l.b16 %v912
        %v1117 = vunpack.c.h.b16 %v912
        %v1118 = vunpack.c.l.b16 %v913
        %v1119 = vunpack.c.h.b16 %v913
        %v1120 = vunpack.c.l.b16 %v914
        %v1121 = vunpack.c.h.b16 %v914
        %v1122 = vunpack.c.l.b16 %v915
        %v1123 = vunpack.c.h.b16 %v915
        %v1124 = vunpack.c.l.b16 %v916
        %v1125 = vunpack.c.h.b16 %v916
        %v1126 = vunpack.c.l.b16 %v917
        %v1127 = vunpack.c.h.b16 %v917
        %v1128 = vunpack.c.l.b16 %v918
        %v1129 = vunpack.c.h.b16 %v918
        %v1130 = vunpack.c.l.b16 %v919
        %v1131 = vunpack.c.h.b16 %v919
        %v1132 = vunpack.c.l.b16 %v920
        %v1133 = vunpack.c.h.b16 %v920
        %v1134 = vunpack.c.l.b16 %v921
        %v1135 = vunpack.c.h.b16 %v921
        %v1136 = vpack.c.b16 %v1012, %v1008
        %v1137 = vpack.c.b16 %v1013, %v1009
        %v1138 = vpack.c.b16 %v1014, %v1010
        %v1139 = vpack.c.b16 %v1015, %v1011
        %v1140 = vpack.c.b16 %v1020, %v1016
        %v1141 = vpack.c.b16 %v1021, %v1017
        %v1142 = vpack.c.b16 %v1022, %v1018
        %v1143 = vpack.c.b16 %v1023, %v1019
        %v1144 = vpack.c.b16 %v1028, %v1024
        %v1145 = vpack.c.b16 %v1029, %v1025
        %v1146 = vpack.c.b16 %v1030, %v1026
        %v1147 = vpack.c.b16 %v1031, %v1027
        %v1148 = vpack.c.b16 %v1036, %v1032
        %v1149 = vpack.c.b16 %v1037, %v1033
        %v1150 = vpack.c.b16 %v1038, %v1034
        %v1151 = vpack.c.b16 %v1039, %v1035
        %v1152 = vpack.c.b16 %v1044, %v1040
        %v1153 = vpack.c.b16 %v1045, %v1041
        %v1154 = vpack.c.b16 %v1046, %v1042
        %v1155 = vpack.c.b16 %v1047, %v1043
        %v1156 = vpack.c.b16 %v1052, %v1048
        %v1157 = vpack.c.b16 %v1053, %v1049
        %v1158 = vpack.c.b16 %v1054, %v1050
        %v1159 = vpack.c.b16 %v1055, %v1051
        %v1160 = vpack.c.b16 %v1060, %v1056
        %v1161 = vpack.c.b16 %v1061, %v1057
        %v1162 = vpack.c.b16 %v1062, %v1058
        %v1163 = vpack.c.b16 %v1063, %v1059
        %v1164 = vpack.c.b16 %v1068, %v1064
        %v1165 = vpack.c.b16 %v1069, %v1065
        %v1166 = vpack.c.b16 %v1070, %v1066
        %v1167 = vpack.c.b16 %v1071, %v1067
        %v1168 = vpack.c.b16 %v1076, %v1072
        %v1169 = vpack.c.b16 %v1077, %v1073
        %v1170 = vpack.c.b16 %v1078, %v1074
        %v1171 = vpack.c.b16 %v1079, %v1075
        %v1172 = vpack.c.b16 %v1084, %v1080
        %v1173 = vpack.c.b16 %v1085, %v1081
        %v1174 = vpack.c.b16 %v1086, %v1082
        %v1175 = vpack.c.b16 %v1087, %v1083
        %v1176 = vpack.c.b16 %v1092, %v1088
        %v1177 = vpack.c.b16 %v1093, %v1089
        %v1178 = vpack.c.b16 %v1094, %v1090
        %v1179 = vpack.c.b16 %v1095, %v1091
        %v1180 = vpack.c.b16 %v1100, %v1096
        %v1181 = vpack.c.b16 %v1101, %v1097
        %v1182 = vpack.c.b16 %v1102, %v1098
        %v1183 = vpack.c.b16 %v1103, %v1099
        %v1184 = vpack.c.b16 %v1108, %v1104
        %v1185 = vpack.c.b16 %v1109, %v1105
        %v1186 = vpack.c.b16 %v1110, %v1106
        %v1187 = vpack.c.b16 %v1111, %v1107
        %v1188 = vpack.c.b16 %v1116, %v1112
        %v1189 = vpack.c.b16 %v1117, %v1113
        %v1190 = vpack.c.b16 %v1118, %v1114
        %v1191 = vpack.c.b16 %v1119, %v1115
        %v1192 = vpack.c.b16 %v1124, %v1120
        %v1193 = vpack.c.b16 %v1125, %v1121
        %v1194 = vpack.c.b16 %v1126, %v1122
        %v1195 = vpack.c.b16 %v1127, %v1123
        %v1196 = vpack.c.b16 %v1132, %v1128
        %v1197 = vpack.c.b16 %v1133, %v1129
        %v1198 = vpack.c.b16 %v1134, %v1130
        %v1199 = vpack.c.b16 %v1135, %v1131
        %1264 = vmatprep.subr.bf16.mxu0 %v1137
        %1265 = vmatpush1.bf16.msra.mxu0 %v1136
        %1266 = vmatprep.subr.bf16.mxu0 %v1141
        %1267 = vmatpush1.bf16.msra.mxu0 %v1140
        %1268 = vmatprep.subr.bf16.mxu0 %v1145
        %1269 = vmatpush1.bf16.msra.mxu0 %v1144
        %1270 = vmatprep.subr.bf16.mxu0 %v1149
        %1271 = vmatpush1.bf16.msra.mxu0 %v1148
        %1272 = vmatprep.subr.bf16.mxu0 %v1153
        %1273 = vmatpush1.bf16.msra.mxu0 %v1152
        %1274 = vmatprep.subr.bf16.mxu0 %v1157
        %1275 = vmatpush1.bf16.msra.mxu0 %v1156
        %1276 = vmatprep.subr.bf16.mxu0 %v1161
        %1277 = vmatpush1.bf16.msra.mxu0 %v1160
        %1278 = vmatprep.subr.bf16.mxu0 %v1165
        %1279 = vmatpush1.bf16.msra.mxu0 %v1164
        %1280 = vmatprep.subr.bf16.mxu0 %v1169
        %1281 = vmatpush1.bf16.msra.mxu0 %v1168
        %1282 = vmatprep.subr.bf16.mxu0 %v1173
        %1283 = vmatpush1.bf16.msra.mxu0 %v1172
        %1284 = vmatprep.subr.bf16.mxu0 %v1177
        %1285 = vmatpush1.bf16.msra.mxu0 %v1176
        %1286 = vmatprep.subr.bf16.mxu0 %v1181
        %1287 = vmatpush1.bf16.msra.mxu0 %v1180
        %1288 = vmatprep.subr.bf16.mxu0 %v1185
        %1289 = vmatpush1.bf16.msra.mxu0 %v1184
        %1290 = vmatprep.subr.bf16.mxu0 %v1189
        %1291 = vmatpush1.bf16.msra.mxu0 %v1188
        %1292 = vmatprep.subr.bf16.mxu0 %v1193
        %1293 = vmatpush1.bf16.msra.mxu0 %v1192
        %1294 = vmatprep.subr.bf16.mxu0 %v1197
        %1295 = vmatpush1.bf16.msra.mxu0 %v1196
        %1296 = vmatprep.mubr.bf16.mxu0 %v843
        %1297 = vmatmul.mubr.bf16.gmra.mrb[0].mxu0 %v842
        %v1298 = vpop.f32.mrb[0].mxu0
        %v1299 = vadd.f32 %v927, %v1298
        %v1300 = vpop.f32.mrb[0].mxu0
        %v1301 = vadd.f32 %v931, %v1300
        %v1302 = vpop.f32.mrb[0].mxu0
        %v1303 = vadd.f32 %v927, %v1302
        %v1304 = vpop.f32.mrb[0].mxu0
        %v1305 = vadd.f32 %v931, %v1304
        %1306 = vmatprep.mubr.bf16.mxu0 %v845
        %1307 = vmatmul.mubr.bf16.gmra.mrb[0].mxu0 %v844
        %v1308 = vpop.f32.mrb[0].mxu0
        %v1309 = vadd.f32 %v927, %v1308
        %v1310 = vpop.f32.mrb[0].mxu0
        %v1311 = vadd.f32 %v931, %v1310
        %v1312 = vpop.f32.mrb[0].mxu0
        %v1313 = vadd.f32 %v927, %v1312
        %v1314 = vpop.f32.mrb[0].mxu0
        %v1315 = vadd.f32 %v931, %v1314
        %1316 = vmatprep.mubr.bf16.mxu0 %v847
        %1317 = vmatmul.mubr.bf16.gmra.mrb[0].mxu0 %v846
        %v1318 = vpop.f32.mrb[0].mxu0
        %v1319 = vadd.f32 %v927, %v1318
        %v1320 = vpop.f32.mrb[0].mxu0
        %v1321 = vadd.f32 %v931, %v1320
        %v1322 = vpop.f32.mrb[0].mxu0
        %v1323 = vadd.f32 %v927, %v1322
        %v1324 = vpop.f32.mrb[0].mxu0
        %v1325 = vadd.f32 %v931, %v1324
        %1326 = vmatprep.mubr.bf16.mxu0 %v849
        %1327 = vmatmul.mubr.bf16.gmra.mrb[0].mxu0 %v848
        %v1328 = vpop.f32.mrb[0].mxu0
        %v1329 = vadd.f32 %v927, %v1328
        %v1330 = vpop.f32.mrb[0].mxu0
        %v1331 = vadd.f32 %v931, %v1330
        %v1332 = vpop.f32.mrb[0].mxu0
        %v1333 = vadd.f32 %v927, %v1332
        %v1334 = vpop.f32.mrb[0].mxu0
        %v1335 = vadd.f32 %v931, %v1334
        %1336 = vmatprep.mubr.bf16.mxu0 %v851
        %1337 = vmatmul.mubr.bf16.gmra.mrb[0].mxu0 %v850
        %v1338 = vpop.f32.mrb[0].mxu0
        %v1339 = vadd.f32 %v927, %v1338
        %v1340 = vpop.f32.mrb[0].mxu0
        %v1341 = vadd.f32 %v931, %v1340
        %v1342 = vpop.f32.mrb[0].mxu0
        %v1343 = vadd.f32 %v927, %v1342
        %v1344 = vpop.f32.mrb[0].mxu0
        %v1345 = vadd.f32 %v931, %v1344
        %1346 = vmatprep.mubr.bf16.mxu0 %v853
        %1347 = vmatmul.mubr.bf16.gmra.mrb[0].mxu0 %v852
        %v1348 = vpop.f32.mrb[0].mxu0
        %v1349 = vadd.f32 %v927, %v1348
        %v1350 = vpop.f32.mrb[0].mxu0
        %v1351 = vadd.f32 %v931, %v1350
        %v1352 = vpop.f32.mrb[0].mxu0
        %v1353 = vadd.f32 %v927, %v1352
        %v1354 = vpop.f32.mrb[0].mxu0
        %v1355 = vadd.f32 %v931, %v1354
        %1356 = vmatprep.mubr.bf16.mxu0 %v855
        %1357 = vmatmul.mubr.bf16.gmra.mrb[0].mxu0 %v854
        %v1358 = vpop.f32.mrb[0].mxu0
        %v1359 = vadd.f32 %v927, %v1358
        %v1360 = vpop.f32.mrb[0].mxu0
        %v1361 = vadd.f32 %v931, %v1360
        %v1362 = vpop.f32.mrb[0].mxu0
        %v1363 = vadd.f32 %v927, %v1362
        %v1364 = vpop.f32.mrb[0].mxu0
        %v1365 = vadd.f32 %v931, %v1364
        %1366 = vmatprep.mubr.bf16.mxu0 %v857
        %1367 = vmatmul.mubr.bf16.gmra.mrb[0].mxu0 %v856
        %v1368 = vpop.f32.mrb[0].mxu0
        %v1369 = vadd.f32 %v927, %v1368
        %v1370 = vpop.f32.mrb[0].mxu0
        %v1371 = vadd.f32 %v931, %v1370
        %v1372 = vpop.f32.mrb[0].mxu0
        %v1373 = vadd.f32 %v927, %v1372
        %v1374 = vpop.f32.mrb[0].mxu0
        %v1375 = vadd.f32 %v931, %v1374
        %1376 = vdwg.mxu0
        %1377 = vmatprep.subr.bf16.mxu0 %v1139
        %1378 = vmatpush1.bf16.msra.mxu0 %v1138
        %1379 = vmatprep.subr.bf16.mxu0 %v1143
        %1380 = vmatpush1.bf16.msra.mxu0 %v1142
        %1381 = vmatprep.subr.bf16.mxu0 %v1147
        %1382 = vmatpush1.bf16.msra.mxu0 %v1146
        %1383 = vmatprep.subr.bf16.mxu0 %v1151
        %1384 = vmatpush1.bf16.msra.mxu0 %v1150
        %1385 = vmatprep.subr.bf16.mxu0 %v1155
        %1386 = vmatpush1.bf16.msra.mxu0 %v1154
        %1387 = vmatprep.subr.bf16.mxu0 %v1159
        %1388 = vmatpush1.bf16.msra.mxu0 %v1158
        %1389 = vmatprep.subr.bf16.mxu0 %v1163
        %1390 = vmatpush1.bf16.msra.mxu0 %v1162
        %1391 = vmatprep.subr.bf16.mxu0 %v1167
        %1392 = vmatpush1.bf16.msra.mxu0 %v1166
        %1393 = vmatprep.subr.bf16.mxu0 %v1171
        %1394 = vmatpush1.bf16.msra.mxu0 %v1170
        %1395 = vmatprep.subr.bf16.mxu0 %v1175
        %1396 = vmatpush1.bf16.msra.mxu0 %v1174
        %1397 = vmatprep.subr.bf16.mxu0 %v1179
        %1398 = vmatpush1.bf16.msra.mxu0 %v1178
        %1399 = vmatprep.subr.bf16.mxu0 %v1183
        %1400 = vmatpush1.bf16.msra.mxu0 %v1182
        %1401 = vmatprep.subr.bf16.mxu0 %v1187
        %1402 = vmatpush1.bf16.msra.mxu0 %v1186
        %1403 = vmatprep.subr.bf16.mxu0 %v1191
        %1404 = vmatpush1.bf16.msra.mxu0 %v1190
        %1405 = vmatprep.subr.bf16.mxu0 %v1195
        %1406 = vmatpush1.bf16.msra.mxu0 %v1194
        %1407 = vmatprep.subr.bf16.mxu0 %v1199
        %1408 = vmatpush1.bf16.msra.mxu0 %v1198
        %1409 = vmatprep.mubr.bf16.mxu0 %v843
        %1410 = vmatmul.mubr.bf16.gmra.mrb[0].mxu0 %v842
        %v1411 = vpop.f32.mrb[0].mxu0
        %v1412 = vadd.f32 %v935, %v1411
        %v1413 = vpop.f32.mrb[0].mxu0
        %v1414 = vadd.f32 %v939, %v1413
        %v1415 = vpop.f32.mrb[0].mxu0
        %v1416 = vadd.f32 %v935, %v1415
        %v1417 = vpop.f32.mrb[0].mxu0
        %v1418 = vadd.f32 %v939, %v1417
        %1419 = vmatprep.mubr.bf16.mxu0 %v845
        %1420 = vmatmul.mubr.bf16.gmra.mrb[0].mxu0 %v844
        %v1421 = vpop.f32.mrb[0].mxu0
        %v1422 = vadd.f32 %v935, %v1421
        %v1423 = vpop.f32.mrb[0].mxu0
        %v1424 = vadd.f32 %v939, %v1423
        %v1425 = vpop.f32.mrb[0].mxu0
        %v1426 = vadd.f32 %v935, %v1425
        %v1427 = vpop.f32.mrb[0].mxu0
        %v1428 = vadd.f32 %v939, %v1427
        %1429 = vmatprep.mubr.bf16.mxu0 %v847
        %1430 = vmatmul.mubr.bf16.gmra.mrb[0].mxu0 %v846
        %v1431 = vpop.f32.mrb[0].mxu0
        %v1432 = vadd.f32 %v935, %v1431
        %v1433 = vpop.f32.mrb[0].mxu0
        %v1434 = vadd.f32 %v939, %v1433
        %v1435 = vpop.f32.mrb[0].mxu0
        %v1436 = vadd.f32 %v935, %v1435
        %v1437 = vpop.f32.mrb[0].mxu0
        %v1438 = vadd.f32 %v939, %v1437
        %1439 = vmatprep.mubr.bf16.mxu0 %v849
        %1440 = vmatmul.mubr.bf16.gmra.mrb[0].mxu0 %v848
        %v1441 = vpop.f32.mrb[0].mxu0
        %v1442 = vadd.f32 %v935, %v1441
        %v1443 = vpop.f32.mrb[0].mxu0
        %v1444 = vadd.f32 %v939, %v1443
        %v1445 = vpop.f32.mrb[0].mxu0
        %v1446 = vadd.f32 %v935, %v1445
        %v1447 = vpop.f32.mrb[0].mxu0
        %v1448 = vadd.f32 %v939, %v1447
        %1449 = vmatprep.mubr.bf16.mxu0 %v851
        %1450 = vmatmul.mubr.bf16.gmra.mrb[0].mxu0 %v850
        %v1451 = vpop.f32.mrb[0].mxu0
        %v1452 = vadd.f32 %v935, %v1451
        %v1453 = vpop.f32.mrb[0].mxu0
        %v1454 = vadd.f32 %v939, %v1453
        %v1455 = vpop.f32.mrb[0].mxu0
        %v1456 = vadd.f32 %v935, %v1455
        %v1457 = vpop.f32.mrb[0].mxu0
        %v1458 = vadd.f32 %v939, %v1457
        %1459 = vmatprep.mubr.bf16.mxu0 %v853
        %1460 = vmatmul.mubr.bf16.gmra.mrb[0].mxu0 %v852
        %v1461 = vpop.f32.mrb[0].mxu0
        %v1462 = vadd.f32 %v935, %v1461
        %v1463 = vpop.f32.mrb[0].mxu0
        %v1464 = vadd.f32 %v939, %v1463
        %v1465 = vpop.f32.mrb[0].mxu0
        %v1466 = vadd.f32 %v935, %v1465
        %v1467 = vpop.f32.mrb[0].mxu0
        %v1468 = vadd.f32 %v939, %v1467
        %1469 = vmatprep.mubr.bf16.mxu0 %v855
        %1470 = vmatmul.mubr.bf16.gmra.mrb[0].mxu0 %v854
        %v1471 = vpop.f32.mrb[0].mxu0
        %v1472 = vadd.f32 %v935, %v1471
        %v1473 = vpop.f32.mrb[0].mxu0
        %v1474 = vadd.f32 %v939, %v1473
        %v1475 = vpop.f32.mrb[0].mxu0
        %v1476 = vadd.f32 %v935, %v1475
        %v1477 = vpop.f32.mrb[0].mxu0
        %v1478 = vadd.f32 %v939, %v1477
        %1479 = vmatprep.mubr.bf16.mxu0 %v857
        %1480 = vmatmul.mubr.bf16.gmra.mrb[0].mxu0 %v856
        %v1481 = vpop.f32.mrb[0].mxu0
        %v1482 = vadd.f32 %v935, %v1481
        %v1483 = vpop.f32.mrb[0].mxu0
        %v1484 = vadd.f32 %v939, %v1483
        %v1485 = vpop.f32.mrb[0].mxu0
        %v1486 = vadd.f32 %v935, %v1485
        %v1487 = vpop.f32.mrb[0].mxu0
        %v1488 = vadd.f32 %v939, %v1487
        %1489 = vdwg.mxu0
        %v1490 = vmax.f32 %v1299, 0.0
        %v1491 = vmax.f32 %v1301, 0.0
        %v1492 = vmax.f32 %v1412, 0.0
        %v1493 = vmax.f32 %v1414, 0.0
        %v1494 = vmax.f32 %v1303, 0.0
        %v1495 = vmax.f32 %v1305, 0.0
        %v1496 = vmax.f32 %v1416, 0.0
        %v1497 = vmax.f32 %v1418, 0.0
        %v1498 = vmax.f32 %v1309, 0.0
        %v1499 = vmax.f32 %v1311, 0.0
        %v1500 = vmax.f32 %v1422, 0.0
        %v1501 = vmax.f32 %v1424, 0.0
        %v1502 = vmax.f32 %v1313, 0.0
        %v1503 = vmax.f32 %v1315, 0.0
        %v1504 = vmax.f32 %v1426, 0.0
        %v1505 = vmax.f32 %v1428, 0.0
        %v1506 = vmax.f32 %v1319, 0.0
        %v1507 = vmax.f32 %v1321, 0.0
        %v1508 = vmax.f32 %v1432, 0.0
        %v1509 = vmax.f32 %v1434, 0.0
        %v1510 = vmax.f32 %v1323, 0.0
        %v1511 = vmax.f32 %v1325, 0.0
        %v1512 = vmax.f32 %v1436, 0.0
        %v1513 = vmax.f32 %v1438, 0.0
        %v1514 = vmax.f32 %v1329, 0.0
        %v1515 = vmax.f32 %v1331, 0.0
        %v1516 = vmax.f32 %v1442, 0.0
        %v1517 = vmax.f32 %v1444, 0.0
        %v1518 = vmax.f32 %v1333, 0.0
        %v1519 = vmax.f32 %v1335, 0.0
        %v1520 = vmax.f32 %v1446, 0.0
        %v1521 = vmax.f32 %v1448, 0.0
        %v1522 = vmax.f32 %v1339, 0.0
        %v1523 = vmax.f32 %v1341, 0.0
        %v1524 = vmax.f32 %v1452, 0.0
        %v1525 = vmax.f32 %v1454, 0.0
        %v1526 = vmax.f32 %v1343, 0.0
        %v1527 = vmax.f32 %v1345, 0.0
        %v1528 = vmax.f32 %v1456, 0.0
        %v1529 = vmax.f32 %v1458, 0.0
        %v1530 = vmax.f32 %v1349, 0.0
        %v1531 = vmax.f32 %v1351, 0.0
        %v1532 = vmax.f32 %v1462, 0.0
        %v1533 = vmax.f32 %v1464, 0.0
        %v1534 = vmax.f32 %v1353, 0.0
        %v1535 = vmax.f32 %v1355, 0.0
        %v1536 = vmax.f32 %v1466, 0.0
        %v1537 = vmax.f32 %v1468, 0.0
        %v1538 = vmax.f32 %v1359, 0.0
        %v1539 = vmax.f32 %v1361, 0.0
        %v1540 = vmax.f32 %v1472, 0.0
        %v1541 = vmax.f32 %v1474, 0.0
        %v1542 = vmax.f32 %v1363, 0.0
        %v1543 = vmax.f32 %v1365, 0.0
        %v1544 = vmax.f32 %v1476, 0.0
        %v1545 = vmax.f32 %v1478, 0.0
        %v1546 = vmax.f32 %v1369, 0.0
        %v1547 = vmax.f32 %v1371, 0.0
        %v1548 = vmax.f32 %v1482, 0.0
        %v1549 = vmax.f32 %v1484, 0.0
        %v1550 = vmax.f32 %v1373, 0.0
        %v1551 = vmax.f32 %v1375, 0.0
        %v1552 = vmax.f32 %v1486, 0.0
        %v1553 = vmax.f32 %v1488, 0.0
        %v1554 = vpack.c.bf16 %v1494, %v1490
        %v1555 = vpack.c.bf16 %v1495, %v1491
        %v1556 = vpack.c.bf16 %v1496, %v1492
        %v1557 = vpack.c.bf16 %v1497, %v1493
        %v1558 = vpack.c.bf16 %v1502, %v1498
        %v1559 = vpack.c.bf16 %v1503, %v1499
        %v1560 = vpack.c.bf16 %v1504, %v1500
        %v1561 = vpack.c.bf16 %v1505, %v1501
        %v1562 = vpack.c.bf16 %v1510, %v1506
        %v1563 = vpack.c.bf16 %v1511, %v1507
        %v1564 = vpack.c.bf16 %v1512, %v1508
        %v1565 = vpack.c.bf16 %v1513, %v1509
        %v1566 = vpack.c.bf16 %v1518, %v1514
        %v1567 = vpack.c.bf16 %v1519, %v1515
        %v1568 = vpack.c.bf16 %v1520, %v1516
        %v1569 = vpack.c.bf16 %v1521, %v1517
        %v1570 = vpack.c.bf16 %v1526, %v1522
        %v1571 = vpack.c.bf16 %v1527, %v1523
        %v1572 = vpack.c.bf16 %v1528, %v1524
        %v1573 = vpack.c.bf16 %v1529, %v1525
        %v1574 = vpack.c.bf16 %v1534, %v1530
        %v1575 = vpack.c.bf16 %v1535, %v1531
        %v1576 = vpack.c.bf16 %v1536, %v1532
        %v1577 = vpack.c.bf16 %v1537, %v1533
        %v1578 = vpack.c.bf16 %v1542, %v1538
        %v1579 = vpack.c.bf16 %v1543, %v1539
        %v1580 = vpack.c.bf16 %v1544, %v1540
        %v1581 = vpack.c.bf16 %v1545, %v1541
        %v1582 = vpack.c.bf16 %v1550, %v1546
        %v1583 = vpack.c.bf16 %v1551, %v1547
        %v1584 = vpack.c.bf16 %v1552, %v1548
        %v1585 = vpack.c.bf16 %v1553, %v1549
        %v1586 = vld [vmem:[#allocation5] sm:$0xff]
        %v1587 = vld [vmem:[#allocation5 + $0x8] sm:$0xff]
        %v1588 = vld [vmem:[#allocation5 + $0x10] sm:$0xff]
        %v1589 = vld [vmem:[#allocation5 + $0x18] sm:$0xff]
        %v1590 = vld [vmem:[#allocation5 + $0x20] sm:$0xff]
        %v1591 = vld [vmem:[#allocation5 + $0x28] sm:$0xff]
        %v1592 = vld [vmem:[#allocation5 + $0x30] sm:$0xff]
        %v1593 = vld [vmem:[#allocation5 + $0x38] sm:$0xff]
        %v1594 = vld [vmem:[#allocation5 + $0x40] sm:$0xff]
        %v1595 = vld [vmem:[#allocation5 + $0x48] sm:$0xff]
        %v1596 = vld [vmem:[#allocation5 + $0x50] sm:$0xff]
        %v1597 = vld [vmem:[#allocation5 + $0x58] sm:$0xff]
        %v1598 = vld [vmem:[#allocation5 + $0x60] sm:$0xff]
        %v1599 = vld [vmem:[#allocation5 + $0x68] sm:$0xff]
        %v1600 = vld [vmem:[#allocation5 + $0x70] sm:$0xff]
        %v1601 = vld [vmem:[#allocation5 + $0x78] sm:$0xff]
        %v1602 = vld [vmem:[#allocation5 + $0x80] sm:$0xff]
        %v1603 = vld [vmem:[#allocation5 + $0x88] sm:$0xff]
        %v1604 = vld [vmem:[#allocation5 + $0x90] sm:$0xff]
        %v1605 = vld [vmem:[#allocation5 + $0x98] sm:$0xff]
        %v1606 = vld [vmem:[#allocation5 + $0xa0] sm:$0xff]
        %v1607 = vld [vmem:[#allocation5 + $0xa8] sm:$0xff]
        %v1608 = vld [vmem:[#allocation5 + $0xb0] sm:$0xff]
        %v1609 = vld [vmem:[#allocation5 + $0xb8] sm:$0xff]
        %v1610 = vld [vmem:[#allocation5 + $0xc0] sm:$0xff]
        %v1611 = vld [vmem:[#allocation5 + $0xc8] sm:$0xff]
        %v1612 = vld [vmem:[#allocation5 + $0xd0] sm:$0xff]
        %v1613 = vld [vmem:[#allocation5 + $0xd8] sm:$0xff]
        %v1614 = vld [vmem:[#allocation5 + $0xe0] sm:$0xff]
        %v1615 = vld [vmem:[#allocation5 + $0xe8] sm:$0xff]
        %v1616 = vld [vmem:[#allocation5 + $0xf0] sm:$0xff]
        %v1617 = vld [vmem:[#allocation5 + $0xf8] sm:$0xff]
        %v1618 = vld [vmem:[#allocation5 + $0x100] sm:$0xff]
        %v1619 = vld [vmem:[#allocation5 + $0x108] sm:$0xff]
        %v1620 = vld [vmem:[#allocation5 + $0x110] sm:$0xff]
        %v1621 = vld [vmem:[#allocation5 + $0x118] sm:$0xff]
        %v1622 = vld [vmem:[#allocation5 + $0x120] sm:$0xff]
        %v1623 = vld [vmem:[#allocation5 + $0x128] sm:$0xff]
        %v1624 = vld [vmem:[#allocation5 + $0x130] sm:$0xff]
        %v1625 = vld [vmem:[#allocation5 + $0x138] sm:$0xff]
        %v1626 = vld [vmem:[#allocation5 + $0x140] sm:$0xff]
        %v1627 = vld [vmem:[#allocation5 + $0x148] sm:$0xff]
        %v1628 = vld [vmem:[#allocation5 + $0x150] sm:$0xff]
        %v1629 = vld [vmem:[#allocation5 + $0x158] sm:$0xff]
        %v1630 = vld [vmem:[#allocation5 + $0x160] sm:$0xff]
        %v1631 = vld [vmem:[#allocation5 + $0x168] sm:$0xff]
        %v1632 = vld [vmem:[#allocation5 + $0x170] sm:$0xff]
        %v1633 = vld [vmem:[#allocation5 + $0x178] sm:$0xff]
        %v1634 = vld [vmem:[#allocation5 + $0x180] sm:$0xff]
        %v1635 = vld [vmem:[#allocation5 + $0x188] sm:$0xff]
        %v1636 = vld [vmem:[#allocation5 + $0x190] sm:$0xff]
        %v1637 = vld [vmem:[#allocation5 + $0x198] sm:$0xff]
        %v1638 = vld [vmem:[#allocation5 + $0x1a0] sm:$0xff]
        %v1639 = vld [vmem:[#allocation5 + $0x1a8] sm:$0xff]
        %v1640 = vld [vmem:[#allocation5 + $0x1b0] sm:$0xff]
        %v1641 = vld [vmem:[#allocation5 + $0x1b8] sm:$0xff]
        %v1642 = vld [vmem:[#allocation5 + $0x1c0] sm:$0xff]
        %v1643 = vld [vmem:[#allocation5 + $0x1c8] sm:$0xff]
        %v1644 = vld [vmem:[#allocation5 + $0x1d0] sm:$0xff]
        %v1645 = vld [vmem:[#allocation5 + $0x1d8] sm:$0xff]
        %v1646 = vld [vmem:[#allocation5 + $0x1e0] sm:$0xff]
        %v1647 = vld [vmem:[#allocation5 + $0x1e8] sm:$0xff]
        %v1648 = vld [vmem:[#allocation5 + $0x1f0] sm:$0xff]
        %v1649 = vld [vmem:[#allocation5 + $0x1f8] sm:$0xff]
        %v1650 = vld [vmem:[%s8] sm:$0x3]
        %v1652 = vlaneseq
        %v1653 = vshrl.u32 %v1652, 7
        %v1654 = vsub.s32 0, %v1653
        %v1655 = vrot.slane %v1650, %v1654
        %v1656 = vlaneseq
        %v1657 = vshrl.u32 %v1656, 7
        %v1658 = vsub.s32 1, %v1657
        %v1659 = vrot.slane %v1650, %v1658
        %v1726 = vunpack.c.l.b16 %v1586
        %v1727 = vunpack.c.h.b16 %v1586
        %v1728 = vunpack.c.l.b16 %v1587
        %v1729 = vunpack.c.h.b16 %v1587
        %v1730 = vunpack.c.l.b16 %v1588
        %v1731 = vunpack.c.h.b16 %v1588
        %v1732 = vunpack.c.l.b16 %v1589
        %v1733 = vunpack.c.h.b16 %v1589
        %v1734 = vunpack.c.l.b16 %v1590
        %v1735 = vunpack.c.h.b16 %v1590
        %v1736 = vunpack.c.l.b16 %v1591
        %v1737 = vunpack.c.h.b16 %v1591
        %v1738 = vunpack.c.l.b16 %v1592
        %v1739 = vunpack.c.h.b16 %v1592
        %v1740 = vunpack.c.l.b16 %v1593
        %v1741 = vunpack.c.h.b16 %v1593
        %v1742 = vunpack.c.l.b16 %v1594
        %v1743 = vunpack.c.h.b16 %v1594
        %v1744 = vunpack.c.l.b16 %v1595
        %v1745 = vunpack.c.h.b16 %v1595
        %v1746 = vunpack.c.l.b16 %v1596
        %v1747 = vunpack.c.h.b16 %v1596
        %v1748 = vunpack.c.l.b16 %v1597
        %v1749 = vunpack.c.h.b16 %v1597
        %v1750 = vunpack.c.l.b16 %v1598
        %v1751 = vunpack.c.h.b16 %v1598
        %v1752 = vunpack.c.l.b16 %v1599
        %v1753 = vunpack.c.h.b16 %v1599
        %v1754 = vunpack.c.l.b16 %v1600
        %v1755 = vunpack.c.h.b16 %v1600
        %v1756 = vunpack.c.l.b16 %v1601
        %v1757 = vunpack.c.h.b16 %v1601
        %v1758 = vunpack.c.l.b16 %v1602
        %v1759 = vunpack.c.h.b16 %v1602
        %v1760 = vunpack.c.l.b16 %v1603
        %v1761 = vunpack.c.h.b16 %v1603
        %v1762 = vunpack.c.l.b16 %v1604
        %v1763 = vunpack.c.h.b16 %v1604
        %v1764 = vunpack.c.l.b16 %v1605
        %v1765 = vunpack.c.h.b16 %v1605
        %v1766 = vunpack.c.l.b16 %v1606
        %v1767 = vunpack.c.h.b16 %v1606
        %v1768 = vunpack.c.l.b16 %v1607
        %v1769 = vunpack.c.h.b16 %v1607
        %v1770 = vunpack.c.l.b16 %v1608
        %v1771 = vunpack.c.h.b16 %v1608
        %v1772 = vunpack.c.l.b16 %v1609
        %v1773 = vunpack.c.h.b16 %v1609
        %v1774 = vunpack.c.l.b16 %v1610
        %v1775 = vunpack.c.h.b16 %v1610
        %v1776 = vunpack.c.l.b16 %v1611
        %v1777 = vunpack.c.h.b16 %v1611
        %v1778 = vunpack.c.l.b16 %v1612
        %v1779 = vunpack.c.h.b16 %v1612
        %v1780 = vunpack.c.l.b16 %v1613
        %v1781 = vunpack.c.h.b16 %v1613
        %v1782 = vunpack.c.l.b16 %v1614
        %v1783 = vunpack.c.h.b16 %v1614
        %v1784 = vunpack.c.l.b16 %v1615
        %v1785 = vunpack.c.h.b16 %v1615
        %v1786 = vunpack.c.l.b16 %v1616
        %v1787 = vunpack.c.h.b16 %v1616
        %v1788 = vunpack.c.l.b16 %v1617
        %v1789 = vunpack.c.h.b16 %v1617
        %v1790 = vunpack.c.l.b16 %v1618
        %v1791 = vunpack.c.h.b16 %v1618
        %v1792 = vunpack.c.l.b16 %v1619
        %v1793 = vunpack.c.h.b16 %v1619
        %v1794 = vunpack.c.l.b16 %v1620
        %v1795 = vunpack.c.h.b16 %v1620
        %v1796 = vunpack.c.l.b16 %v1621
        %v1797 = vunpack.c.h.b16 %v1621
        %v1798 = vunpack.c.l.b16 %v1622
        %v1799 = vunpack.c.h.b16 %v1622
        %v1800 = vunpack.c.l.b16 %v1623
        %v1801 = vunpack.c.h.b16 %v1623
        %v1802 = vunpack.c.l.b16 %v1624
        %v1803 = vunpack.c.h.b16 %v1624
        %v1804 = vunpack.c.l.b16 %v1625
        %v1805 = vunpack.c.h.b16 %v1625
        %v1806 = vunpack.c.l.b16 %v1626
        %v1807 = vunpack.c.h.b16 %v1626
        %v1808 = vunpack.c.l.b16 %v1627
        %v1809 = vunpack.c.h.b16 %v1627
        %v1810 = vunpack.c.l.b16 %v1628
        %v1811 = vunpack.c.h.b16 %v1628
        %v1812 = vunpack.c.l.b16 %v1629
        %v1813 = vunpack.c.h.b16 %v1629
        %v1814 = vunpack.c.l.b16 %v1630
        %v1815 = vunpack.c.h.b16 %v1630
        %v1816 = vunpack.c.l.b16 %v1631
        %v1817 = vunpack.c.h.b16 %v1631
        %v1818 = vunpack.c.l.b16 %v1632
        %v1819 = vunpack.c.h.b16 %v1632
        %v1820 = vunpack.c.l.b16 %v1633
        %v1821 = vunpack.c.h.b16 %v1633
        %v1822 = vunpack.c.l.b16 %v1634
        %v1823 = vunpack.c.h.b16 %v1634
        %v1824 = vunpack.c.l.b16 %v1635
        %v1825 = vunpack.c.h.b16 %v1635
        %v1826 = vunpack.c.l.b16 %v1636
        %v1827 = vunpack.c.h.b16 %v1636
        %v1828 = vunpack.c.l.b16 %v1637
        %v1829 = vunpack.c.h.b16 %v1637
        %v1830 = vunpack.c.l.b16 %v1638
        %v1831 = vunpack.c.h.b16 %v1638
        %v1832 = vunpack.c.l.b16 %v1639
        %v1833 = vunpack.c.h.b16 %v1639
        %v1834 = vunpack.c.l.b16 %v1640
        %v1835 = vunpack.c.h.b16 %v1640
        %v1836 = vunpack.c.l.b16 %v1641
        %v1837 = vunpack.c.h.b16 %v1641
        %v1838 = vunpack.c.l.b16 %v1642
        %v1839 = vunpack.c.h.b16 %v1642
        %v1840 = vunpack.c.l.b16 %v1643
        %v1841 = vunpack.c.h.b16 %v1643
        %v1842 = vunpack.c.l.b16 %v1644
        %v1843 = vunpack.c.h.b16 %v1644
        %v1844 = vunpack.c.l.b16 %v1645
        %v1845 = vunpack.c.h.b16 %v1645
        %v1846 = vunpack.c.l.b16 %v1646
        %v1847 = vunpack.c.h.b16 %v1646
        %v1848 = vunpack.c.l.b16 %v1647
        %v1849 = vunpack.c.h.b16 %v1647
        %v1850 = vunpack.c.l.b16 %v1648
        %v1851 = vunpack.c.h.b16 %v1648
        %v1852 = vunpack.c.l.b16 %v1649
        %v1853 = vunpack.c.h.b16 %v1649
        %v1854 = vpack.c.b16 %v1728, %v1726
        %v1855 = vpack.c.b16 %v1729, %v1727
        %v1856 = vpack.c.b16 %v1732, %v1730
        %v1857 = vpack.c.b16 %v1733, %v1731
        %v1858 = vpack.c.b16 %v1736, %v1734
        %v1859 = vpack.c.b16 %v1737, %v1735
        %v1860 = vpack.c.b16 %v1740, %v1738
        %v1861 = vpack.c.b16 %v1741, %v1739
        %v1862 = vpack.c.b16 %v1744, %v1742
        %v1863 = vpack.c.b16 %v1745, %v1743
        %v1864 = vpack.c.b16 %v1748, %v1746
        %v1865 = vpack.c.b16 %v1749, %v1747
        %v1866 = vpack.c.b16 %v1752, %v1750
        %v1867 = vpack.c.b16 %v1753, %v1751
        %v1868 = vpack.c.b16 %v1756, %v1754
        %v1869 = vpack.c.b16 %v1757, %v1755
        %v1870 = vpack.c.b16 %v1760, %v1758
        %v1871 = vpack.c.b16 %v1761, %v1759
        %v1872 = vpack.c.b16 %v1764, %v1762
        %v1873 = vpack.c.b16 %v1765, %v1763
        %v1874 = vpack.c.b16 %v1768, %v1766
        %v1875 = vpack.c.b16 %v1769, %v1767
        %v1876 = vpack.c.b16 %v1772, %v1770
        %v1877 = vpack.c.b16 %v1773, %v1771
        %v1878 = vpack.c.b16 %v1776, %v1774
        %v1879 = vpack.c.b16 %v1777, %v1775
        %v1880 = vpack.c.b16 %v1780, %v1778
        %v1881 = vpack.c.b16 %v1781, %v1779
        %v1882 = vpack.c.b16 %v1784, %v1782
        %v1883 = vpack.c.b16 %v1785, %v1783
        %v1884 = vpack.c.b16 %v1788, %v1786
        %v1885 = vpack.c.b16 %v1789, %v1787
        %v1886 = vpack.c.b16 %v1792, %v1790
        %v1887 = vpack.c.b16 %v1793, %v1791
        %v1888 = vpack.c.b16 %v1796, %v1794
        %v1889 = vpack.c.b16 %v1797, %v1795
        %v1890 = vpack.c.b16 %v1800, %v1798
        %v1891 = vpack.c.b16 %v1801, %v1799
        %v1892 = vpack.c.b16 %v1804, %v1802
        %v1893 = vpack.c.b16 %v1805, %v1803
        %v1894 = vpack.c.b16 %v1808, %v1806
        %v1895 = vpack.c.b16 %v1809, %v1807
        %v1896 = vpack.c.b16 %v1812, %v1810
        %v1897 = vpack.c.b16 %v1813, %v1811
        %v1898 = vpack.c.b16 %v1816, %v1814
        %v1899 = vpack.c.b16 %v1817, %v1815
        %v1900 = vpack.c.b16 %v1820, %v1818
        %v1901 = vpack.c.b16 %v1821, %v1819
        %v1902 = vpack.c.b16 %v1824, %v1822
        %v1903 = vpack.c.b16 %v1825, %v1823
        %v1904 = vpack.c.b16 %v1828, %v1826
        %v1905 = vpack.c.b16 %v1829, %v1827
        %v1906 = vpack.c.b16 %v1832, %v1830
        %v1907 = vpack.c.b16 %v1833, %v1831
        %v1908 = vpack.c.b16 %v1836, %v1834
        %v1909 = vpack.c.b16 %v1837, %v1835
        %v1910 = vpack.c.b16 %v1840, %v1838
        %v1911 = vpack.c.b16 %v1841, %v1839
        %v1912 = vpack.c.b16 %v1844, %v1842
        %v1913 = vpack.c.b16 %v1845, %v1843
        %v1914 = vpack.c.b16 %v1848, %v1846
        %v1915 = vpack.c.b16 %v1849, %v1847
        %v1916 = vpack.c.b16 %v1852, %v1850
        %v1917 = vpack.c.b16 %v1853, %v1851
        %1982 = vmatprep.subr.bf16.mxu0 %v1855
        %1983 = vmatpush1.bf16.msra.mxu0 %v1854
        %1984 = vmatprep.subr.bf16.mxu0 %v1857
        %1985 = vmatpush1.bf16.msra.mxu0 %v1856
        %1986 = vmatprep.subr.bf16.mxu0 %v1859
        %1987 = vmatpush1.bf16.msra.mxu0 %v1858
        %1988 = vmatprep.subr.bf16.mxu0 %v1861
        %1989 = vmatpush1.bf16.msra.mxu0 %v1860
        %1990 = vmatprep.subr.bf16.mxu0 %v1863
        %1991 = vmatpush1.bf16.msra.mxu0 %v1862
        %1992 = vmatprep.subr.bf16.mxu0 %v1865
        %1993 = vmatpush1.bf16.msra.mxu0 %v1864
        %1994 = vmatprep.subr.bf16.mxu0 %v1867
        %1995 = vmatpush1.bf16.msra.mxu0 %v1866
        %1996 = vmatprep.subr.bf16.mxu0 %v1869
        %1997 = vmatpush1.bf16.msra.mxu0 %v1868
        %1998 = vmatprep.subr.bf16.mxu0 %v1871
        %1999 = vmatpush1.bf16.msra.mxu0 %v1870
        %2000 = vmatprep.subr.bf16.mxu0 %v1873
        %2001 = vmatpush1.bf16.msra.mxu0 %v1872
        %2002 = vmatprep.subr.bf16.mxu0 %v1875
        %2003 = vmatpush1.bf16.msra.mxu0 %v1874
        %2004 = vmatprep.subr.bf16.mxu0 %v1877
        %2005 = vmatpush1.bf16.msra.mxu0 %v1876
        %2006 = vmatprep.subr.bf16.mxu0 %v1879
        %2007 = vmatpush1.bf16.msra.mxu0 %v1878
        %2008 = vmatprep.subr.bf16.mxu0 %v1881
        %2009 = vmatpush1.bf16.msra.mxu0 %v1880
        %2010 = vmatprep.subr.bf16.mxu0 %v1883
        %2011 = vmatpush1.bf16.msra.mxu0 %v1882
        %2012 = vmatprep.subr.bf16.mxu0 %v1885
        %2013 = vmatpush1.bf16.msra.mxu0 %v1884
        %2014 = vmatprep.mubr.bf16.mxu0 %v1555
        %2015 = vmatmul.mubr.bf16.gmra.mrb[0].mxu0 %v1554
        %v2016 = vpop.f32.mrb[0].mxu0
        %v2017 = vadd.f32 %v1655, %v2016
        %v2018 = vpop.f32.mrb[0].mxu0
        %v2019 = vadd.f32 %v1659, %v2018
        %v2020 = vpop.f32.mrb[0].mxu0
        %v2021 = vadd.f32 %v1655, %v2020
        %v2022 = vpop.f32.mrb[0].mxu0
        %v2023 = vadd.f32 %v1659, %v2022
        %2024 = vmatprep.mubr.bf16.mxu0 %v1559
        %2025 = vmatmul.mubr.bf16.gmra.mrb[0].mxu0 %v1558
        %v2026 = vpop.f32.mrb[0].mxu0
        %v2027 = vadd.f32 %v1655, %v2026
        %v2028 = vpop.f32.mrb[0].mxu0
        %v2029 = vadd.f32 %v1659, %v2028
        %v2030 = vpop.f32.mrb[0].mxu0
        %v2031 = vadd.f32 %v1655, %v2030
        %v2032 = vpop.f32.mrb[0].mxu0
        %v2033 = vadd.f32 %v1659, %v2032
        %2034 = vmatprep.mubr.bf16.mxu0 %v1563
        %2035 = vmatmul.mubr.bf16.gmra.mrb[0].mxu0 %v1562
        %v2036 = vpop.f32.mrb[0].mxu0
        %v2037 = vadd.f32 %v1655, %v2036
        %v2038 = vpop.f32.mrb[0].mxu0
        %v2039 = vadd.f32 %v1659, %v2038
        %v2040 = vpop.f32.mrb[0].mxu0
        %v2041 = vadd.f32 %v1655, %v2040
        %v2042 = vpop.f32.mrb[0].mxu0
        %v2043 = vadd.f32 %v1659, %v2042
        %2044 = vmatprep.mubr.bf16.mxu0 %v1567
        %2045 = vmatmul.mubr.bf16.gmra.mrb[0].mxu0 %v1566
        %v2046 = vpop.f32.mrb[0].mxu0
        %v2047 = vadd.f32 %v1655, %v2046
        %v2048 = vpop.f32.mrb[0].mxu0
        %v2049 = vadd.f32 %v1659, %v2048
        %v2050 = vpop.f32.mrb[0].mxu0
        %v2051 = vadd.f32 %v1655, %v2050
        %v2052 = vpop.f32.mrb[0].mxu0
        %v2053 = vadd.f32 %v1659, %v2052
        %2054 = vmatprep.mubr.bf16.mxu0 %v1571
        %2055 = vmatmul.mubr.bf16.gmra.mrb[0].mxu0 %v1570
        %v2056 = vpop.f32.mrb[0].mxu0
        %v2057 = vadd.f32 %v1655, %v2056
        %v2058 = vpop.f32.mrb[0].mxu0
        %v2059 = vadd.f32 %v1659, %v2058
        %v2060 = vpop.f32.mrb[0].mxu0
        %v2061 = vadd.f32 %v1655, %v2060
        %v2062 = vpop.f32.mrb[0].mxu0
        %v2063 = vadd.f32 %v1659, %v2062
        %2064 = vmatprep.mubr.bf16.mxu0 %v1575
        %2065 = vmatmul.mubr.bf16.gmra.mrb[0].mxu0 %v1574
        %v2066 = vpop.f32.mrb[0].mxu0
        %v2067 = vadd.f32 %v1655, %v2066
        %v2068 = vpop.f32.mrb[0].mxu0
        %v2069 = vadd.f32 %v1659, %v2068
        %v2070 = vpop.f32.mrb[0].mxu0
        %v2071 = vadd.f32 %v1655, %v2070
        %v2072 = vpop.f32.mrb[0].mxu0
        %v2073 = vadd.f32 %v1659, %v2072
        %2074 = vmatprep.mubr.bf16.mxu0 %v1579
        %2075 = vmatmul.mubr.bf16.gmra.mrb[0].mxu0 %v1578
        %v2076 = vpop.f32.mrb[0].mxu0
        %v2077 = vadd.f32 %v1655, %v2076
        %v2078 = vpop.f32.mrb[0].mxu0
        %v2079 = vadd.f32 %v1659, %v2078
        %v2080 = vpop.f32.mrb[0].mxu0
        %v2081 = vadd.f32 %v1655, %v2080
        %v2082 = vpop.f32.mrb[0].mxu0
        %v2083 = vadd.f32 %v1659, %v2082
        %2084 = vmatprep.mubr.bf16.mxu0 %v1583
        %2085 = vmatmul.mubr.bf16.gmra.mrb[0].mxu0 %v1582
        %v2086 = vpop.f32.mrb[0].mxu0
        %v2087 = vadd.f32 %v1655, %v2086
        %v2088 = vpop.f32.mrb[0].mxu0
        %v2089 = vadd.f32 %v1659, %v2088
        %v2090 = vpop.f32.mrb[0].mxu0
        %v2091 = vadd.f32 %v1655, %v2090
        %v2092 = vpop.f32.mrb[0].mxu0
        %v2093 = vadd.f32 %v1659, %v2092
        %2094 = vdwg.mxu0
        %2095 = vmatprep.subr.bf16.mxu0 %v1887
        %2096 = vmatpush1.bf16.msra.mxu0 %v1886
        %2097 = vmatprep.subr.bf16.mxu0 %v1889
        %2098 = vmatpush1.bf16.msra.mxu0 %v1888
        %2099 = vmatprep.subr.bf16.mxu0 %v1891
        %2100 = vmatpush1.bf16.msra.mxu0 %v1890
        %2101 = vmatprep.subr.bf16.mxu0 %v1893
        %2102 = vmatpush1.bf16.msra.mxu0 %v1892
        %2103 = vmatprep.subr.bf16.mxu0 %v1895
        %2104 = vmatpush1.bf16.msra.mxu0 %v1894
        %2105 = vmatprep.subr.bf16.mxu0 %v1897
        %2106 = vmatpush1.bf16.msra.mxu0 %v1896
        %2107 = vmatprep.subr.bf16.mxu0 %v1899
        %2108 = vmatpush1.bf16.msra.mxu0 %v1898
        %2109 = vmatprep.subr.bf16.mxu0 %v1901
        %2110 = vmatpush1.bf16.msra.mxu0 %v1900
        %2111 = vmatprep.subr.bf16.mxu0 %v1903
        %2112 = vmatpush1.bf16.msra.mxu0 %v1902
        %2113 = vmatprep.subr.bf16.mxu0 %v1905
        %2114 = vmatpush1.bf16.msra.mxu0 %v1904
        %2115 = vmatprep.subr.bf16.mxu0 %v1907
        %2116 = vmatpush1.bf16.msra.mxu0 %v1906
        %2117 = vmatprep.subr.bf16.mxu0 %v1909
        %2118 = vmatpush1.bf16.msra.mxu0 %v1908
        %2119 = vmatprep.subr.bf16.mxu0 %v1911
        %2120 = vmatpush1.bf16.msra.mxu0 %v1910
        %2121 = vmatprep.subr.bf16.mxu0 %v1913
        %2122 = vmatpush1.bf16.msra.mxu0 %v1912
        %2123 = vmatprep.subr.bf16.mxu0 %v1915
        %2124 = vmatpush1.bf16.msra.mxu0 %v1914
        %2125 = vmatprep.subr.bf16.mxu0 %v1917
        %2126 = vmatpush1.bf16.msra.mxu0 %v1916
        %2127 = vmatprep.mubr.bf16.mxu0 %v1557
        %2128 = vmatmul.mubr.bf16.gmra.mrb[0].mxu0 %v1556
        %v2129 = vpop.f32.mrb[0].mxu0
        %v2130 = vadd.f32 %v2017, %v2129
        %v2131 = vpop.f32.mrb[0].mxu0
        %v2132 = vadd.f32 %v2019, %v2131
        %v2133 = vpop.f32.mrb[0].mxu0
        %v2134 = vadd.f32 %v2021, %v2133
        %v2135 = vpop.f32.mrb[0].mxu0
        %v2136 = vadd.f32 %v2023, %v2135
        %2137 = vmatprep.mubr.bf16.mxu0 %v1561
        %2138 = vmatmul.mubr.bf16.gmra.mrb[0].mxu0 %v1560
        %v2139 = vpop.f32.mrb[0].mxu0
        %v2140 = vadd.f32 %v2027, %v2139
        %v2141 = vpop.f32.mrb[0].mxu0
        %v2142 = vadd.f32 %v2029, %v2141
        %v2143 = vpop.f32.mrb[0].mxu0
        %v2144 = vadd.f32 %v2031, %v2143
        %v2145 = vpop.f32.mrb[0].mxu0
        %v2146 = vadd.f32 %v2033, %v2145
        %2147 = vmatprep.mubr.bf16.mxu0 %v1565
        %2148 = vmatmul.mubr.bf16.gmra.mrb[0].mxu0 %v1564
        %v2149 = vpop.f32.mrb[0].mxu0
        %v2150 = vadd.f32 %v2037, %v2149
        %v2151 = vpop.f32.mrb[0].mxu0
        %v2152 = vadd.f32 %v2039, %v2151
        %v2153 = vpop.f32.mrb[0].mxu0
        %v2154 = vadd.f32 %v2041, %v2153
        %v2155 = vpop.f32.mrb[0].mxu0
        %v2156 = vadd.f32 %v2043, %v2155
        %2157 = vmatprep.mubr.bf16.mxu0 %v1569
        %2158 = vmatmul.mubr.bf16.gmra.mrb[0].mxu0 %v1568
        %v2159 = vpop.f32.mrb[0].mxu0
        %v2160 = vadd.f32 %v2047, %v2159
        %v2161 = vpop.f32.mrb[0].mxu0
        %v2162 = vadd.f32 %v2049, %v2161
        %v2163 = vpop.f32.mrb[0].mxu0
        %v2164 = vadd.f32 %v2051, %v2163
        %v2165 = vpop.f32.mrb[0].mxu0
        %v2166 = vadd.f32 %v2053, %v2165
        %2167 = vmatprep.mubr.bf16.mxu0 %v1573
        %2168 = vmatmul.mubr.bf16.gmra.mrb[0].mxu0 %v1572
        %v2169 = vpop.f32.mrb[0].mxu0
        %v2170 = vadd.f32 %v2057, %v2169
        %v2171 = vpop.f32.mrb[0].mxu0
        %v2172 = vadd.f32 %v2059, %v2171
        %v2173 = vpop.f32.mrb[0].mxu0
        %v2174 = vadd.f32 %v2061, %v2173
        %v2175 = vpop.f32.mrb[0].mxu0
        %v2176 = vadd.f32 %v2063, %v2175
        %2177 = vmatprep.mubr.bf16.mxu0 %v1577
        %2178 = vmatmul.mubr.bf16.gmra.mrb[0].mxu0 %v1576
        %v2179 = vpop.f32.mrb[0].mxu0
        %v2180 = vadd.f32 %v2067, %v2179
        %v2181 = vpop.f32.mrb[0].mxu0
        %v2182 = vadd.f32 %v2069, %v2181
        %v2183 = vpop.f32.mrb[0].mxu0
        %v2184 = vadd.f32 %v2071, %v2183
        %v2185 = vpop.f32.mrb[0].mxu0
        %v2186 = vadd.f32 %v2073, %v2185
        %2187 = vmatprep.mubr.bf16.mxu0 %v1581
        %2188 = vmatmul.mubr.bf16.gmra.mrb[0].mxu0 %v1580
        %v2189 = vpop.f32.mrb[0].mxu0
        %v2190 = vadd.f32 %v2077, %v2189
        %v2191 = vpop.f32.mrb[0].mxu0
        %v2192 = vadd.f32 %v2079, %v2191
        %v2193 = vpop.f32.mrb[0].mxu0
        %v2194 = vadd.f32 %v2081, %v2193
        %v2195 = vpop.f32.mrb[0].mxu0
        %v2196 = vadd.f32 %v2083, %v2195
        %2197 = vmatprep.mubr.bf16.mxu0 %v1585
        %2198 = vmatmul.mubr.bf16.gmra.mrb[0].mxu0 %v1584
        %v2199 = vpop.f32.mrb[0].mxu0
        %v2200 = vadd.f32 %v2087, %v2199
        %v2201 = vpop.f32.mrb[0].mxu0
        %v2202 = vadd.f32 %v2089, %v2201
        %v2203 = vpop.f32.mrb[0].mxu0
        %v2204 = vadd.f32 %v2091, %v2203
        %v2205 = vpop.f32.mrb[0].mxu0
        %v2206 = vadd.f32 %v2093, %v2205
        %2207 = vdwg.mxu0
        %v2208 = vmax.f32 %v2130, 0.0
        %v2209 = vmax.f32 %v2132, 0.0
        %v2210 = vmax.f32 %v2134, 0.0
        %v2211 = vmax.f32 %v2136, 0.0
        %v2212 = vmax.f32 %v2140, 0.0
        %v2213 = vmax.f32 %v2142, 0.0
        %v2214 = vmax.f32 %v2144, 0.0
        %v2215 = vmax.f32 %v2146, 0.0
        %v2216 = vmax.f32 %v2150, 0.0
        %v2217 = vmax.f32 %v2152, 0.0
        %v2218 = vmax.f32 %v2154, 0.0
        %v2219 = vmax.f32 %v2156, 0.0
        %v2220 = vmax.f32 %v2160, 0.0
        %v2221 = vmax.f32 %v2162, 0.0
        %v2222 = vmax.f32 %v2164, 0.0
        %v2223 = vmax.f32 %v2166, 0.0
        %v2224 = vmax.f32 %v2170, 0.0
        %v2225 = vmax.f32 %v2172, 0.0
        %v2226 = vmax.f32 %v2174, 0.0
        %v2227 = vmax.f32 %v2176, 0.0
        %v2228 = vmax.f32 %v2180, 0.0
        %v2229 = vmax.f32 %v2182, 0.0
        %v2230 = vmax.f32 %v2184, 0.0
        %v2231 = vmax.f32 %v2186, 0.0
        %v2232 = vmax.f32 %v2190, 0.0
        %v2233 = vmax.f32 %v2192, 0.0
        %v2234 = vmax.f32 %v2194, 0.0
        %v2235 = vmax.f32 %v2196, 0.0
        %v2236 = vmax.f32 %v2200, 0.0
        %v2237 = vmax.f32 %v2202, 0.0
        %v2238 = vmax.f32 %v2204, 0.0
        %v2239 = vmax.f32 %v2206, 0.0
        %v2240 = vpack.c.bf16 %v2210, %v2208
        %v2241 = vpack.c.bf16 %v2211, %v2209
        %v2242 = vpack.c.bf16 %v2214, %v2212
        %v2243 = vpack.c.bf16 %v2215, %v2213
        %v2244 = vpack.c.bf16 %v2218, %v2216
        %v2245 = vpack.c.bf16 %v2219, %v2217
        %v2246 = vpack.c.bf16 %v2222, %v2220
        %v2247 = vpack.c.bf16 %v2223, %v2221
        %v2248 = vpack.c.bf16 %v2226, %v2224
        %v2249 = vpack.c.bf16 %v2227, %v2225
        %v2250 = vpack.c.bf16 %v2230, %v2228
        %v2251 = vpack.c.bf16 %v2231, %v2229
        %v2252 = vpack.c.bf16 %v2234, %v2232
        %v2253 = vpack.c.bf16 %v2235, %v2233
        %v2254 = vpack.c.bf16 %v2238, %v2236
        %v2255 = vpack.c.bf16 %v2239, %v2237
        %v2256 = vld [vmem:[%s9] sm:$0xf]
        %v2257 = vld [vmem:[%s9 + $0x4] sm:$0xf]
        %v2258 = vld [vmem:[%s9 + $0x8] sm:$0xf]
        %v2259 = vld [vmem:[%s9 + $0xc] sm:$0xf]
        %v2260 = vld [vmem:[%s9 + $0x10] sm:$0xf]
        %v2261 = vld [vmem:[%s9 + $0x14] sm:$0xf]
        %v2262 = vld [vmem:[%s9 + $0x18] sm:$0xf]
        %v2263 = vld [vmem:[%s9 + $0x1c] sm:$0xf]
        %v2264 = vld [vmem:[%s9 + $0x20] sm:$0xf]
        %v2265 = vld [vmem:[%s9 + $0x24] sm:$0xf]
        %v2266 = vld [vmem:[%s9 + $0x28] sm:$0xf]
        %v2267 = vld [vmem:[%s9 + $0x2c] sm:$0xf]
        %v2268 = vld [vmem:[%s9 + $0x30] sm:$0xf]
        %v2269 = vld [vmem:[%s9 + $0x34] sm:$0xf]
        %v2270 = vld [vmem:[%s9 + $0x38] sm:$0xf]
        %v2271 = vld [vmem:[%s9 + $0x3c] sm:$0xf]
        %v2272 = vld [vmem:[%s9 + $0x40] sm:$0xf]
        %v2273 = vld [vmem:[%s9 + $0x44] sm:$0xf]
        %v2274 = vld [vmem:[%s9 + $0x48] sm:$0xf]
        %v2275 = vld [vmem:[%s9 + $0x4c] sm:$0xf]
        %v2276 = vld [vmem:[%s9 + $0x50] sm:$0xf]
        %v2277 = vld [vmem:[%s9 + $0x54] sm:$0xf]
        %v2278 = vld [vmem:[%s9 + $0x58] sm:$0xf]
        %v2279 = vld [vmem:[%s9 + $0x5c] sm:$0xf]
        %v2280 = vld [vmem:[%s9 + $0x60] sm:$0xf]
        %v2281 = vld [vmem:[%s9 + $0x64] sm:$0xf]
        %v2282 = vld [vmem:[%s9 + $0x68] sm:$0xf]
        %v2283 = vld [vmem:[%s9 + $0x6c] sm:$0xf]
        %v2284 = vld [vmem:[%s9 + $0x70] sm:$0xf]
        %v2285 = vld [vmem:[%s9 + $0x74] sm:$0xf]
        %v2286 = vld [vmem:[%s9 + $0x78] sm:$0xf]
        %v2287 = vld [vmem:[%s9 + $0x7c] sm:$0xf]
        %v2288 = vld [vmem:[%s10] sm:$0x1]
        %v2290 = vlaneseq
        %v2291 = vshrl.u32 %v2290, 7
        %v2292 = vsub.s32 0, %v2291
        %v2293 = vrot.slane %v2288, %v2292
        %v2327 = vunpack.c.l.b16 %v2256
        %v2328 = vunpack.c.l.b16 %v2257
        %v2329 = vunpack.c.l.b16 %v2258
        %v2330 = vunpack.c.l.b16 %v2259
        %v2331 = vunpack.c.l.b16 %v2260
        %v2332 = vunpack.c.l.b16 %v2261
        %v2333 = vunpack.c.l.b16 %v2262
        %v2334 = vunpack.c.l.b16 %v2263
        %v2335 = vunpack.c.l.b16 %v2264
        %v2336 = vunpack.c.l.b16 %v2265
        %v2337 = vunpack.c.l.b16 %v2266
        %v2338 = vunpack.c.l.b16 %v2267
        %v2339 = vunpack.c.l.b16 %v2268
        %v2340 = vunpack.c.l.b16 %v2269
        %v2341 = vunpack.c.l.b16 %v2270
        %v2342 = vunpack.c.l.b16 %v2271
        %v2343 = vunpack.c.l.b16 %v2272
        %v2344 = vunpack.c.l.b16 %v2273
        %v2345 = vunpack.c.l.b16 %v2274
        %v2346 = vunpack.c.l.b16 %v2275
        %v2347 = vunpack.c.l.b16 %v2276
        %v2348 = vunpack.c.l.b16 %v2277
        %v2349 = vunpack.c.l.b16 %v2278
        %v2350 = vunpack.c.l.b16 %v2279
        %v2351 = vunpack.c.l.b16 %v2280
        %v2352 = vunpack.c.l.b16 %v2281
        %v2353 = vunpack.c.l.b16 %v2282
        %v2354 = vunpack.c.l.b16 %v2283
        %v2355 = vunpack.c.l.b16 %v2284
        %v2356 = vunpack.c.l.b16 %v2285
        %v2357 = vunpack.c.l.b16 %v2286
        %v2358 = vunpack.c.l.b16 %v2287
        %v2359 = vpack.c.b16 %v2328, %v2327
        %v2360 = vpack.c.b16 %v2330, %v2329
        %v2361 = vpack.c.b16 %v2332, %v2331
        %v2362 = vpack.c.b16 %v2334, %v2333
        %v2363 = vpack.c.b16 %v2336, %v2335
        %v2364 = vpack.c.b16 %v2338, %v2337
        %v2365 = vpack.c.b16 %v2340, %v2339
        %v2366 = vpack.c.b16 %v2342, %v2341
        %v2367 = vpack.c.b16 %v2344, %v2343
        %v2368 = vpack.c.b16 %v2346, %v2345
        %v2369 = vpack.c.b16 %v2348, %v2347
        %v2370 = vpack.c.b16 %v2350, %v2349
        %v2371 = vpack.c.b16 %v2352, %v2351
        %v2372 = vpack.c.b16 %v2354, %v2353
        %v2373 = vpack.c.b16 %v2356, %v2355
        %v2374 = vpack.c.b16 %v2358, %v2357
        %2391 = vmatprep.subr.bf16.mxu0 0
        %2392 = vmatpush1.bf16.msra.mxu0 %v2359
        %2393 = vmatprep.subr.bf16.mxu0 0
        %2394 = vmatpush1.bf16.msra.mxu0 %v2360
        %2395 = vmatprep.subr.bf16.mxu0 0
        %2396 = vmatpush1.bf16.msra.mxu0 %v2361
        %2397 = vmatprep.subr.bf16.mxu0 0
        %2398 = vmatpush1.bf16.msra.mxu0 %v2362
        %2399 = vmatprep.subr.bf16.mxu0 0
        %2400 = vmatpush1.bf16.msra.mxu0 %v2363
        %2401 = vmatprep.subr.bf16.mxu0 0
        %2402 = vmatpush1.bf16.msra.mxu0 %v2364
        %2403 = vmatprep.subr.bf16.mxu0 0
        %2404 = vmatpush1.bf16.msra.mxu0 %v2365
        %2405 = vmatprep.subr.bf16.mxu0 0
        %2406 = vmatpush1.bf16.msra.mxu0 %v2366
        %2407 = vmatprep.subr.bf16.mxu0 0
        %2408 = vmatpush1.bf16.msra.mxu0 %v2367
        %2409 = vmatprep.subr.bf16.mxu0 0
        %2410 = vmatpush1.bf16.msra.mxu0 %v2368
        %2411 = vmatprep.subr.bf16.mxu0 0
        %2412 = vmatpush1.bf16.msra.mxu0 %v2369
        %2413 = vmatprep.subr.bf16.mxu0 0
        %2414 = vmatpush1.bf16.msra.mxu0 %v2370
        %2415 = vmatprep.subr.bf16.mxu0 0
        %2416 = vmatpush1.bf16.msra.mxu0 %v2371
        %2417 = vmatprep.subr.bf16.mxu0 0
        %2418 = vmatpush1.bf16.msra.mxu0 %v2372
        %2419 = vmatprep.subr.bf16.mxu0 0
        %2420 = vmatpush1.bf16.msra.mxu0 %v2373
        %2421 = vmatprep.subr.bf16.mxu0 0
        %2422 = vmatpush1.bf16.msra.mxu0 %v2374
        %2423 = vmatprep.mubr.bf16.mxu0 %v2241
        %2424 = vmatmul.mubr.bf16.gmra.mrb[0].mxu0 %v2240
        %v2425 = vpop.f32.mrb[0].mxu0
        %v2426 = vadd.f32 %v2293, %v2425
        %v2427 = vpop.f32.mrb[0].mxu0
        %v2428 = vpop.f32.mrb[0].mxu0
        %v2429 = vadd.f32 %v2293, %v2428
        %v2430 = vpop.f32.mrb[0].mxu0
        %2431 = vmatprep.mubr.bf16.mxu0 %v2243
        %2432 = vmatmul.mubr.bf16.gmra.mrb[0].mxu0 %v2242
        %v2433 = vpop.f32.mrb[0].mxu0
        %v2434 = vadd.f32 %v2293, %v2433
        %v2435 = vpop.f32.mrb[0].mxu0
        %v2436 = vpop.f32.mrb[0].mxu0
        %v2437 = vadd.f32 %v2293, %v2436
        %v2438 = vpop.f32.mrb[0].mxu0
        %2439 = vmatprep.mubr.bf16.mxu0 %v2245
        %2440 = vmatmul.mubr.bf16.gmra.mrb[0].mxu0 %v2244
        %v2441 = vpop.f32.mrb[0].mxu0
        %v2442 = vadd.f32 %v2293, %v2441
        %v2443 = vpop.f32.mrb[0].mxu0
        %v2444 = vpop.f32.mrb[0].mxu0
        %v2445 = vadd.f32 %v2293, %v2444
        %v2446 = vpop.f32.mrb[0].mxu0
        %2447 = vmatprep.mubr.bf16.mxu0 %v2247
        %2448 = vmatmul.mubr.bf16.gmra.mrb[0].mxu0 %v2246
        %v2449 = vpop.f32.mrb[0].mxu0
        %v2450 = vadd.f32 %v2293, %v2449
        %v2451 = vpop.f32.mrb[0].mxu0
        %v2452 = vpop.f32.mrb[0].mxu0
        %v2453 = vadd.f32 %v2293, %v2452
        %v2454 = vpop.f32.mrb[0].mxu0
        %2455 = vmatprep.mubr.bf16.mxu0 %v2249
        %2456 = vmatmul.mubr.bf16.gmra.mrb[0].mxu0 %v2248
        %v2457 = vpop.f32.mrb[0].mxu0
        %v2458 = vadd.f32 %v2293, %v2457
        %v2459 = vpop.f32.mrb[0].mxu0
        %v2460 = vpop.f32.mrb[0].mxu0
        %v2461 = vadd.f32 %v2293, %v2460
        %v2462 = vpop.f32.mrb[0].mxu0
        %2463 = vmatprep.mubr.bf16.mxu0 %v2251
        %2464 = vmatmul.mubr.bf16.gmra.mrb[0].mxu0 %v2250
        %v2465 = vpop.f32.mrb[0].mxu0
        %v2466 = vadd.f32 %v2293, %v2465
        %v2467 = vpop.f32.mrb[0].mxu0
        %v2468 = vpop.f32.mrb[0].mxu0
        %v2469 = vadd.f32 %v2293, %v2468
        %v2470 = vpop.f32.mrb[0].mxu0
        %2471 = vmatprep.mubr.bf16.mxu0 %v2253
        %2472 = vmatmul.mubr.bf16.gmra.mrb[0].mxu0 %v2252
        %v2473 = vpop.f32.mrb[0].mxu0
        %v2474 = vadd.f32 %v2293, %v2473
        %v2475 = vpop.f32.mrb[0].mxu0
        %v2476 = vpop.f32.mrb[0].mxu0
        %v2477 = vadd.f32 %v2293, %v2476
        %v2478 = vpop.f32.mrb[0].mxu0
        %2479 = vmatprep.mubr.bf16.mxu0 %v2255
        %2480 = vmatmul.mubr.bf16.gmra.mrb[0].mxu0 %v2254
        %v2481 = vpop.f32.mrb[0].mxu0
        %v2482 = vadd.f32 %v2293, %v2481
        %v2483 = vpop.f32.mrb[0].mxu0
        %v2484 = vpop.f32.mrb[0].mxu0
        %v2485 = vadd.f32 %v2293, %v2484
        %v2486 = vpop.f32.mrb[0].mxu0
        %2487 = vdwg.mxu0
        %2488 = vst [vmem:[%s410] sm:$0xff] %v2426
        %2489 = vst [vmem:[%s410 + $0x8] sm:$0xff] %v2429
        %2490 = vst [vmem:[%s410 + $0x10] sm:$0xff] %v2434
        %2491 = vst [vmem:[%s410 + $0x18] sm:$0xff] %v2437
        %2492 = vst [vmem:[%s410 + $0x20] sm:$0xff] %v2442
        %2493 = vst [vmem:[%s410 + $0x28] sm:$0xff] %v2445
        %2494 = vst [vmem:[%s410 + $0x30] sm:$0xff] %v2450
        %2495 = vst [vmem:[%s410 + $0x38] sm:$0xff] %v2453
        %2496 = vst [vmem:[%s410 + $0x40] sm:$0xff] %v2458
        %2497 = vst [vmem:[%s410 + $0x48] sm:$0xff] %v2461
        %2498 = vst [vmem:[%s410 + $0x50] sm:$0xff] %v2466
        %2499 = vst [vmem:[%s410 + $0x58] sm:$0xff] %v2469
        %2500 = vst [vmem:[%s410 + $0x60] sm:$0xff] %v2474
        %2501 = vst [vmem:[%s410 + $0x68] sm:$0xff] %v2477
        %2502 = vst [vmem:[%s410 + $0x70] sm:$0xff] %v2482
        %2503 = vst [vmem:[%s410 + $0x78] sm:$0xff] %v2485
        %s2504 = sand.u32 %s271, 1
        %s2505 = scalar_lea.sflag [#allocation4], %s2504
        %s2506 = sand.u32 %s271, 1
        %s2507 = smul.addr %s2506, 128
        %s2508 = scalar_lea.vmem [#allocation7], %s2507
        // Predicated region
        $region73: #{tpu_custom_call.1} parent=63 // pred_check
          %p2509 = pneg %p281
        $region74: #{tpu_custom_call.1} parent=63 // pred_check_branch
          %2511 = sbr.rel (%p2509) target = $region76
        $region75: #{tpu_custom_call.1} parent=63 // pred_region
          %s2512 = smul.u32 16, %s27
          %s2514 = ssub.s32 2048, 2048
          %2515 = vsyncadd %s2505, %s2514
          %s2516 = smul.addr %s2512, 128
          %s2517 = scalar_lea.hbm %s11, %s2516
          %s2518 = sshll.u32 %s2508, 4
          %s2519 = int_to_ptr.vmem [resolvable:$true] %s2518
          %2524 = dma.vmem_to_hbm [thread:$0]  %s2519, 2048, %s2517, %s2505, 128, 128, 8
        $region76: #{tpu_custom_call.1} parent=63 // pred_fallthru
          _
      $region64: #{tpu_custom_call.1} parent=5 // pred_fallthru
        _
      %p2525 = scmp.le.s32.totalorder 2, %s22
      // Predicated region
      $region77: #{tpu_custom_call.1} parent=5 // pred_check
        %p2526 = pneg %p2525
      $region78: #{tpu_custom_call.1} parent=5 // pred_check_branch
        %2528 = sbr.rel (%p2526) target = $region80
      $region79: #{tpu_custom_call.1} parent=5 // pred_region
        %s2529 = ssub.s32 %s22, 2
        // Predicated region
        $region81: #{tpu_custom_call.1} parent=79 // pred_check
          %p2530 = pneg %p287
        $region82: #{tpu_custom_call.1} parent=79 // pred_check_branch
          %2532 = sbr.rel (%p2530) target = $region84
        $region83: #{tpu_custom_call.1} parent=79 // pred_region
          %s2533 = sand.u32 %s272, 1
          %s2534 = scalar_lea.sflag [#allocation4], %s2533
          %s2535 = sand.u32 %s272, 1
          %s2536 = smul.addr %s2535, 128
          %s2537 = scalar_lea.vmem [#allocation7], %s2536
          %2538 = dma.done %s2534, 2048
        $region84: #{tpu_custom_call.1} parent=79 // pred_fallthru
          _
      $region80: #{tpu_custom_call.1} parent=5 // pred_fallthru
        _
    $region6: #{tpu_custom_call.1} parent=1 // loop_footer
      %s26 = sadd.s32 1, %s22
    $region7: #{tpu_custom_call.1} parent=1 // loop_footer_branch
      %21 = sbr.rel target = $region3
    $region8: #{tpu_custom_call.1} parent=1 // loop_exit
      _
    %2539 = vsyncpa [#allocation3], 1
    %s2540 = scalar_lea.sflag [#allocation3], 1
    %2541 = vsyncpa %s2540, 1
    %2542 = vsyncpa [#allocation6], 1
    %2543 = vsyncpa [#allocation4], 1
    %s2544 = scalar_lea.sflag [#allocation4], 1
    %2545 = vsyncpa %s2544, 1

</llo_original>
